<compile_context>
chip_gen: v7x
topology: tpu7x:2x2x1
jax: 0.10.0
libtpu: 0.0.40
codegen_flags: <defaults>
</compile_context>

<pallas_src>
import functools

import jax
import jax.numpy as jnp
from jax.experimental import pallas as pl
from jax.experimental.pallas import tpu as pltpu


# ------------------------------------------------------------------
# Fused kernel: hoisted input projection + unrolled LSTM + pooling + classifier
# ------------------------------------------------------------------
def _fused_lstm_clf_kernel(x_ref, last_t_ref, w_ih_ref, w_hh_ref, b_ref,
                           clf_w_ref, clf_b_ref, out_ref, xp_ref, *, seq_len):
    # x_ref:     (T*Bt, E)  time-major rows: row = t*Bt + local_b   (f32)
    # last_t_ref:(Bt, 1)    pooling timestep per batch row          (int32)
    # w_ih_ref:  (E, 4H) bf16,  w_hh_ref: (H, 4H) bf16,  b_ref: (1, 4H) f32
    # clf_w_ref: (H, C) f32,    clf_b_ref: (1, C) f32
    # out_ref:   (Bt, C) f32
    # xp_ref:    (T*Bt, 4H) f32 VMEM scratch (hoisted input projection)
    TB, _ = x_ref.shape
    Bt = TB // seq_len
    H = w_hh_ref.shape[0]

    # Hoisted input projection + bias for ALL timesteps: one MXU matmul instead of T
    # tiny ones, and the bias broadcast happens exactly once (not per step).
    xp_ref[...] = (
        jnp.dot(x_ref[...].astype(w_ih_ref.dtype), w_ih_ref[...],
                preferred_element_type=jnp.float32)
        + b_ref[...])

    last_t = last_t_ref[...]                       # (Bt, 1) int32

    h = jnp.zeros((Bt, H), jnp.float32)
    c = jnp.zeros((Bt, H), jnp.float32)
    pooled = jnp.zeros((Bt, H), jnp.float32)

    # T is small and static: fully unrolled so the LLO scheduler can interleave the
    # recurrent matmul / EUP sigmoid-tanh / VPU cell update of adjacent steps.
    for t in range(seq_len):
        gates = (xp_ref[t * Bt:(t + 1) * Bt, :]
                 + jnp.dot(h.astype(w_hh_ref.dtype), w_hh_ref[...],
                           preferred_element_type=jnp.float32))      # (Bt, 4H) f32
        # PyTorch gate order: i, f, g, o  (H = 128 -> lane-aligned full-vreg slices)
        i_g = jax.nn.sigmoid(gates[:, 0 * H:1 * H])
        f_g = jax.nn.sigmoid(gates[:, 1 * H:2 * H])
        g_g = jnp.tanh(gates[:, 2 * H:3 * H])
        o_g = jax.nn.sigmoid(gates[:, 3 * H:4 * H])
        c = f_g * c + i_g * g_g
        h = o_g * jnp.tanh(c)
        # In-register pooling of the hidden state at the selected timestep:
        # no (T, B, H) masked stores, no HBM writeback, no XLA gather afterwards.
        pooled = jnp.where(last_t == t, h, pooled)

    # TODO(synk): self.dropout(pooled) is stochastic at train time; identity at inference.
    out_ref[...] = (jnp.dot(pooled, clf_w_ref[...],
                            preferred_element_type=jnp.float32)
                    + clf_b_ref[...])


def fused_lstm_classifier(x_tiled, last_t_tiled, w_ih_t, w_hh_t, lstm_bias,
                          clf_w_t, clf_b, *, seq_len):
    # x_tiled:      (nb, T*b_tile, E)  time-major rows within each batch tile
    # last_t_tiled: (nb, b_tile, 1)
    nb, TB, E = x_tiled.shape
    b_tile = TB // seq_len
    B = nb * b_tile
    H, G = w_hh_t.shape
    C = clf_w_t.shape[1]

    kernel = functools.partial(_fused_lstm_clf_kernel, seq_len=seq_len)
    return pl.pallas_call(
        kernel,
        out_shape=jax.ShapeDtypeStruct((B, C), jnp.float32),
        grid=(nb,),
        in_specs=[
            pl.BlockSpec((None, TB, E), lambda i: (i, 0, 0)),        # x (batch tile)
            pl.BlockSpec((None, b_tile, 1), lambda i: (i, 0, 0)),    # pooling index
            pl.BlockSpec((E, G), lambda i: (0, 0)),                  # W_ih^T (replicated)
            pl.BlockSpec((H, G), lambda i: (0, 0)),                  # W_hh^T (replicated)
            pl.BlockSpec((1, G), lambda i: (0, 0)),                  # b_ih + b_hh
            pl.BlockSpec((H, C), lambda i: (0, 0)),                  # clf W^T
            pl.BlockSpec((1, C), lambda i: (0, 0)),                  # clf b
        ],
        out_specs=pl.BlockSpec((b_tile, C), lambda i: (i, 0)),
        scratch_shapes=[pltpu.VMEM((TB, G), jnp.float32)],           # hoisted x-projection
        compiler_params=pltpu.CompilerParams(
            dimension_semantics=("parallel",)),                      # batch tiles -> v7x TCs
    )(x_tiled, last_t_tiled, w_ih_t, w_hh_t, lstm_bias, clf_w_t, clf_b)


# ------------------------------------------------------------------
# Parameters (deterministic, synthetic — no checkpoint load)
# ------------------------------------------------------------------
def init_params(key, vocab_size, embedding_dim, hidden_size, num_classes):
    ks = jax.random.split(key, 6)
    s = 0.02
    G = 4 * hidden_size
    return {
        "embedding": jax.random.normal(ks[0], (vocab_size, embedding_dim), jnp.float32),
        # LSTM weights pre-transposed to (in, 4H) and stored bf16 for the MXU;
        # f32 accumulation + f32 gate math is kept inside the kernel.
        "w_ih_t": (jax.random.normal(ks[1], (embedding_dim, G), jnp.float32) * s
                   ).astype(jnp.bfloat16),
        "w_hh_t": (jax.random.normal(ks[2], (hidden_size, G), jnp.float32) * s
                   ).astype(jnp.bfloat16),
        # b_ih + b_hh folded, added once in the hoisted projection.
        "lstm_bias": (jax.random.normal(ks[3], (G,), jnp.float32) * s
                      + jax.random.normal(ks[4], (G,), jnp.float32) * s).reshape(1, G),
        "clf_w_t": jax.random.normal(ks[5], (hidden_size, num_classes), jnp.float32) * s,
        "clf_b": jnp.zeros((1, num_classes), jnp.float32),
    }


# ------------------------------------------------------------------
# Forward pass (matches the PyTorch module semantics, inference mode)
# ------------------------------------------------------------------
def forward(params, input_ids, attention_mask, token_type_ids=None,
            position_ids=None, head_mask=None):
    del token_type_ids, position_ids, head_mask   # unused by the reference forward
    B, T = input_ids.shape
    emb = params["embedding"]

    # Batch tiling policy: whole batch in one program unless B is sublane aligned,
    # in which case use 8-row tiles (parallel grid axis -> second TC on v7x).
    b_tile = 8 if (B % 8 == 0) else B
    nb = B // b_tile

    # Embedding gather (XLA glue). Pure index plumbing on the tiny int ids so the
    # gather writes directly in the kernel tile layout (time-major within a batch
    # tile); no separate transpose of the float activation tensor.
    ids_tiled = (input_ids.reshape(nb, b_tile, T)
                 .transpose(0, 2, 1)
                 .reshape(nb, T * b_tile))
    x_tiled = jnp.take(emb, ids_tiled, axis=0)                    # (nb, T*b_tile, E)

    # PyTorch reference: pooled timestep = index of the FIRST 0 in attention_mask,
    # else max_len - 1.  (Yes — the hidden state *at* the first PAD step; the LSTM
    # also runs over padded steps, exactly like the reference with no packing.)
    has_zero = jnp.any(attention_mask == 0, axis=1)
    first_zero = jnp.argmax(attention_mask == 0, axis=1)
    last_t = jnp.where(has_zero, first_zero, T - 1).astype(jnp.int32)
    last_t_tiled = last_t.reshape(nb, b_tile, 1)

    return fused_lstm_classifier(x_tiled, last_t_tiled,
                                 params["w_ih_t"], params["w_hh_t"],
                                 params["lstm_bias"], params["clf_w_t"],
                                 params["clf_b"], seq_len=T)


# ------------------------------------------------------------------
# Pure-JAX reference (same math / same casts) for a correctness check
# ------------------------------------------------------------------
def _reference_forward(params, input_ids, attention_mask):
    B, T = input_ids.shape
    x = jnp.take(params["embedding"], input_ids, axis=0)          # (B, T, E)
    w_ih, w_hh = params["w_ih_t"], params["w_hh_t"]
    H = w_hh.shape[0]
    bias = params["lstm_bias"]
    h = jnp.zeros((B, H), jnp.float32)
    c = jnp.zeros((B, H), jnp.float32)
    hs = []
    for t in range(T):
        gates = (jnp.dot(x[:, t, :].astype(w_ih.dtype), w_ih,
                         preferred_element_type=jnp.float32)
                 + jnp.dot(h.astype(w_hh.dtype), w_hh,
                           preferred_element_type=jnp.float32)
                 + bias)
        i = jax.nn.sigmoid(gates[:, :H])
        f = jax.nn.sigmoid(gates[:, H:2 * H])
        g = jnp.tanh(gates[:, 2 * H:3 * H])
        o = jax.nn.sigmoid(gates[:, 3 * H:])
        c = f * c + i * g
        h = o * jnp.tanh(c)
        hs.append(h)
    seq = jnp.stack(hs, axis=1)                                   # (B, T, H)
    has_zero = jnp.any(attention_mask == 0, axis=1)
    first_zero = jnp.argmax(attention_mask == 0, axis=1)
    last_t = jnp.where(has_zero, first_zero, T - 1)
    pooled = seq[jnp.arange(B), last_t, :]
    return jnp.dot(pooled, params["clf_w_t"]) + params["clf_b"]


if __name__ == "__main__":
    key = jax.random.PRNGKey(0)
    B, T = 2, 8                 # batch, max_tokenization_length
    vocab_size = 64             # max_vocabulary_size (synthetic small vocab)
    embedding_dim = 32
    hidden_size = 128           # nn.LSTM default in the reference module
    num_classes = 2

    pkey, dkey = jax.random.split(key)
    params = init_params(pkey, vocab_size, embedding_dim, hidden_size, num_classes)

    input_ids = jax.random.randint(dkey, (B, T), 0, vocab_size, dtype=jnp.int32)
    attention_mask = jnp.array([[1, 1, 1, 1, 1, 1, 1, 1],
                                [1, 1, 1, 1, 1, 0, 0, 0]], dtype=jnp.int32)

    fwd = jax.jit(forward)
    logits = fwd(params, input_ids, attention_mask)
    logits = jax.block_until_ready(logits)

    assert logits.shape == (B, num_classes)
    assert bool(jnp.all(jnp.isfinite(logits)))
    ref = _reference_forward(params, input_ids, attention_mask)
    assert bool(jnp.allclose(logits, ref, rtol=1e-3, atol=1e-3)), (logits, ref)
    print("KERNEL_OK")
</pallas_src>

<mosaic_0001>
module attributes {stable_mosaic.version = 11 : i64} {
  func.func @_fused_lstm_clf_kernel(%arg0: i32, %arg1: memref<1x16x32xf32, #tpu.memory_space<vmem>>, %arg2: memref<1x2x1xi32, #tpu.memory_space<vmem>>, %arg3: memref<32x512xbf16, #tpu.memory_space<vmem>>, %arg4: memref<128x512xbf16, #tpu.memory_space<vmem>>, %arg5: memref<1x512xf32, #tpu.memory_space<vmem>>, %arg6: memref<128x2xf32, #tpu.memory_space<vmem>>, %arg7: memref<1x2xf32, #tpu.memory_space<vmem>>, %arg8: memref<2x2xf32, #tpu.memory_space<vmem>>, %arg9: memref<16x512xf32, #tpu.memory_space<vmem>>) attributes {dimension_semantics = [#tpu.dimension_semantics<parallel>], iteration_bounds = array<i64: 1>, scalar_prefetch = 0 : i64, scratch_operands = 1 : i64, tpu.core_type = #tpu.core_type<tc>, window_params = [{transform_indices = @transform_0, window_bounds = array<i64: 1, 16, 32>}, {transform_indices = @transform_1, window_bounds = array<i64: 1, 2, 1>}, {pipeline_mode = #tpu.pipeline_mode<synchronous>, transform_indices = @transform_2, window_bounds = array<i64: 32, 512>}, {pipeline_mode = #tpu.pipeline_mode<synchronous>, transform_indices = @transform_3, window_bounds = array<i64: 128, 512>}, {pipeline_mode = #tpu.pipeline_mode<synchronous>, transform_indices = @transform_4, window_bounds = array<i64: 1, 512>}, {pipeline_mode = #tpu.pipeline_mode<synchronous>, transform_indices = @transform_5, window_bounds = array<i64: 128, 2>}, {pipeline_mode = #tpu.pipeline_mode<synchronous>, transform_indices = @transform_6, window_bounds = array<i64: 1, 2>}, {transform_indices = @transform_7, window_bounds = array<i64: 2, 2>}]} {
    %c0 = arith.constant 0 : index
    %c0_0 = arith.constant 0 : index
    %c0_1 = arith.constant 0 : index
    %0 = vector.load %arg1[%c0, %c0_0, %c0_1] : memref<1x16x32xf32, #tpu.memory_space<vmem>>, vector<1x16x32xf32>
    %1 = vector.shape_cast %0 : vector<1x16x32xf32> to vector<16x32xf32>
    %2 = arith.truncf %1 : vector<16x32xf32> to vector<16x32xbf16>
    %c0_2 = arith.constant 0 : index
    %c0_3 = arith.constant 0 : index
    %3 = vector.load %arg3[%c0_2, %c0_3] : memref<32x512xbf16, #tpu.memory_space<vmem>>, vector<32x512xbf16>
    %cst = arith.constant dense<0.000000e+00> : vector<16x512xf32>
    %4 = tpu.matmul %2, %3, %cst {dimension_numbers = #tpu.dot_dimension_numbers<[1], [0], [0], [1], [0, 0, 1, 1], [], []>} : vector<16x32xbf16>, vector<32x512xbf16>, vector<16x512xf32> -> vector<16x512xf32>
    %c0_4 = arith.constant 0 : index
    %c0_5 = arith.constant 0 : index
    %5 = vector.load %arg5[%c0_4, %c0_5] : memref<1x512xf32, #tpu.memory_space<vmem>>, vector<1x512xf32>
    %6 = vector.broadcast %5 : vector<1x512xf32> to vector<16x512xf32>
    %7 = arith.addf %4, %6 : vector<16x512xf32>
    %c0_6 = arith.constant 0 : index
    %c0_7 = arith.constant 0 : index
    %8 = vector.load %arg9[%c0_6, %c0_7] : memref<16x512xf32, #tpu.memory_space<vmem>>, vector<16x512xf32>
    tpu.vector_store %arg9[%c0_6, %c0_7], %7 {strides = array<i32>} : memref<16x512xf32, #tpu.memory_space<vmem>>, vector<16x512xf32>,
    %c0_8 = arith.constant 0 : index
    %c0_9 = arith.constant 0 : index
    %c0_10 = arith.constant 0 : index
    %9 = vector.load %arg2[%c0_8, %c0_9, %c0_10] : memref<1x2x1xi32, #tpu.memory_space<vmem>>, vector<1x2x1xi32>
    %10 = vector.shape_cast %9 : vector<1x2x1xi32> to vector<2x1xi32>
    %cst_11 = arith.constant 0.000000e+00 : f32
    %11 = vector.broadcast %cst_11 : f32 to vector<2x128xf32>
    %cst_12 = arith.constant 0.000000e+00 : f32
    %12 = vector.broadcast %cst_12 : f32 to vector<2x128xf32>
    %cst_13 = arith.constant 0.000000e+00 : f32
    %13 = vector.broadcast %cst_13 : f32 to vector<2x128xf32>
    %c0_14 = arith.constant 0 : index
    %c0_15 = arith.constant 0 : index
    %14 = vector.load %arg9[%c0_14, %c0_15] : memref<16x512xf32, #tpu.memory_space<vmem>>, vector<2x512xf32>
    %15 = arith.truncf %11 : vector<2x128xf32> to vector<2x128xbf16>
    %c0_16 = arith.constant 0 : index
    %c0_17 = arith.constant 0 : index
    %16 = vector.load %arg4[%c0_16, %c0_17] : memref<128x512xbf16, #tpu.memory_space<vmem>>, vector<128x512xbf16>
    %cst_18 = arith.constant dense<0.000000e+00> : vector<2x512xf32>
    %17 = tpu.matmul %15, %16, %cst_18 {dimension_numbers = #tpu.dot_dimension_numbers<[1], [0], [0], [1], [0, 0, 1, 1], [], []>} : vector<2x128xbf16>, vector<128x512xbf16>, vector<2x512xf32> -> vector<2x512xf32>
    %18 = arith.addf %14, %17 : vector<2x512xf32>
    %19 = vector.extract_strided_slice %18 {offsets = [0, 0], sizes = [2, 128], strides = [1, 1]} : vector<2x512xf32> to vector<2x128xf32>
    %20 = arith.negf %19 : vector<2x128xf32>
    %21 = math.exp %20 : vector<2x128xf32>
    %cst_19 = arith.constant 1.000000e+00 : f32
    %22 = vector.broadcast %cst_19 : f32 to vector<2x128xf32>
    %23 = arith.addf %22, %21 : vector<2x128xf32>
    %24 = arith.divf %22, %23 : vector<2x128xf32>
    %25 = vector.extract_strided_slice %18 {offsets = [0, 128], sizes = [2, 128], strides = [1, 1]} : vector<2x512xf32> to vector<2x128xf32>
    %26 = arith.negf %25 : vector<2x128xf32>
    %27 = math.exp %26 : vector<2x128xf32>
    %cst_20 = arith.constant 1.000000e+00 : f32
    %28 = vector.broadcast %cst_20 : f32 to vector<2x128xf32>
    %29 = arith.addf %28, %27 : vector<2x128xf32>
    %30 = arith.divf %28, %29 : vector<2x128xf32>
    %31 = vector.extract_strided_slice %18 {offsets = [0, 256], sizes = [2, 128], strides = [1, 1]} : vector<2x512xf32> to vector<2x128xf32>
    %32 = math.tanh %31 : vector<2x128xf32>
    %33 = vector.extract_strided_slice %18 {offsets = [0, 384], sizes = [2, 128], strides = [1, 1]} : vector<2x512xf32> to vector<2x128xf32>
    %34 = arith.negf %33 : vector<2x128xf32>
    %35 = math.exp %34 : vector<2x128xf32>
    %cst_21 = arith.constant 1.000000e+00 : f32
    %36 = vector.broadcast %cst_21 : f32 to vector<2x128xf32>
    %37 = arith.addf %36, %35 : vector<2x128xf32>
    %38 = arith.divf %36, %37 : vector<2x128xf32>
    %39 = arith.mulf %30, %12 : vector<2x128xf32>
    %40 = arith.mulf %24, %32 : vector<2x128xf32>
    %41 = arith.addf %39, %40 : vector<2x128xf32>
    %42 = math.tanh %41 : vector<2x128xf32>
    %43 = arith.mulf %38, %42 : vector<2x128xf32>
    %c0_i32 = arith.constant 0 : i32
    %44 = vector.broadcast %c0_i32 : i32 to vector<2x1xi32>
    %45 = arith.cmpi eq, %10, %44 : vector<2x1xi32>
    %46 = vector.shape_cast %45 : vector<2x1xi1> to vector<2x1xi1>
    %47 = vector.broadcast %46 : vector<2x1xi1> to vector<2x128xi1>
    %48 = arith.select %47, %43, %13 : vector<2x128xi1>, vector<2x128xf32>
    %c2 = arith.constant 2 : index
    %c0_22 = arith.constant 0 : index
    %49 = vector.load %arg9[%c2, %c0_22] : memref<16x512xf32, #tpu.memory_space<vmem>>, vector<2x512xf32>
    %50 = arith.truncf %43 : vector<2x128xf32> to vector<2x128xbf16>
    %c0_23 = arith.constant 0 : index
    %c0_24 = arith.constant 0 : index
    %51 = vector.load %arg4[%c0_23, %c0_24] : memref<128x512xbf16, #tpu.memory_space<vmem>>, vector<128x512xbf16>
    %cst_25 = arith.constant dense<0.000000e+00> : vector<2x512xf32>
    %52 = tpu.matmul %50, %51, %cst_25 {dimension_numbers = #tpu.dot_dimension_numbers<[1], [0], [0], [1], [0, 0, 1, 1], [], []>} : vector<2x128xbf16>, vector<128x512xbf16>, vector<2x512xf32> -> vector<2x512xf32>
    %53 = arith.addf %49, %52 : vector<2x512xf32>
    %54 = vector.extract_strided_slice %53 {offsets = [0, 0], sizes = [2, 128], strides = [1, 1]} : vector<2x512xf32> to vector<2x128xf32>
    %55 = arith.negf %54 : vector<2x128xf32>
    %56 = math.exp %55 : vector<2x128xf32>
    %cst_26 = arith.constant 1.000000e+00 : f32
    %57 = vector.broadcast %cst_26 : f32 to vector<2x128xf32>
    %58 = arith.addf %57, %56 : vector<2x128xf32>
    %59 = arith.divf %57, %58 : vector<2x128xf32>
    %60 = vector.extract_strided_slice %53 {offsets = [0, 128], sizes = [2, 128], strides = [1, 1]} : vector<2x512xf32> to vector<2x128xf32>
    %61 = arith.negf %60 : vector<2x128xf32>
    %62 = math.exp %61 : vector<2x128xf32>
    %cst_27 = arith.constant 1.000000e+00 : f32
    %63 = vector.broadcast %cst_27 : f32 to vector<2x128xf32>
    %64 = arith.addf %63, %62 : vector<2x128xf32>
    %65 = arith.divf %63, %64 : vector<2x128xf32>
    %66 = vector.extract_strided_slice %53 {offsets = [0, 256], sizes = [2, 128], strides = [1, 1]} : vector<2x512xf32> to vector<2x128xf32>
    %67 = math.tanh %66 : vector<2x128xf32>
    %68 = vector.extract_strided_slice %53 {offsets = [0, 384], sizes = [2, 128], strides = [1, 1]} : vector<2x512xf32> to vector<2x128xf32>
    %69 = arith.negf %68 : vector<2x128xf32>
    %70 = math.exp %69 : vector<2x128xf32>
    %cst_28 = arith.constant 1.000000e+00 : f32
    %71 = vector.broadcast %cst_28 : f32 to vector<2x128xf32>
    %72 = arith.addf %71, %70 : vector<2x128xf32>
    %73 = arith.divf %71, %72 : vector<2x128xf32>
    %74 = arith.mulf %65, %41 : vector<2x128xf32>
    %75 = arith.mulf %59, %67 : vector<2x128xf32>
    %76 = arith.addf %74, %75 : vector<2x128xf32>
    %77 = math.tanh %76 : vector<2x128xf32>
    %78 = arith.mulf %73, %77 : vector<2x128xf32>
    %c1_i32 = arith.constant 1 : i32
    %79 = vector.broadcast %c1_i32 : i32 to vector<2x1xi32>
    %80 = arith.cmpi eq, %10, %79 : vector<2x1xi32>
    %81 = vector.shape_cast %80 : vector<2x1xi1> to vector<2x1xi1>
    %82 = vector.broadcast %81 : vector<2x1xi1> to vector<2x128xi1>
    %83 = arith.select %82, %78, %48 : vector<2x128xi1>, vector<2x128xf32>
    %c4 = arith.constant 4 : index
    %c0_29 = arith.constant 0 : index
    %84 = vector.load %arg9[%c4, %c0_29] : memref<16x512xf32, #tpu.memory_space<vmem>>, vector<2x512xf32>
    %85 = arith.truncf %78 : vector<2x128xf32> to vector<2x128xbf16>
    %c0_30 = arith.constant 0 : index
    %c0_31 = arith.constant 0 : index
    %86 = vector.load %arg4[%c0_30, %c0_31] : memref<128x512xbf16, #tpu.memory_space<vmem>>, vector<128x512xbf16>
    %cst_32 = arith.constant dense<0.000000e+00> : vector<2x512xf32>
    %87 = tpu.matmul %85, %86, %cst_32 {dimension_numbers = #tpu.dot_dimension_numbers<[1], [0], [0], [1], [0, 0, 1, 1], [], []>} : vector<2x128xbf16>, vector<128x512xbf16>, vector<2x512xf32> -> vector<2x512xf32>
    %88 = arith.addf %84, %87 : vector<2x512xf32>
    %89 = vector.extract_strided_slice %88 {offsets = [0, 0], sizes = [2, 128], strides = [1, 1]} : vector<2x512xf32> to vector<2x128xf32>
    %90 = arith.negf %89 : vector<2x128xf32>
    %91 = math.exp %90 : vector<2x128xf32>
    %cst_33 = arith.constant 1.000000e+00 : f32
    %92 = vector.broadcast %cst_33 : f32 to vector<2x128xf32>
    %93 = arith.addf %92, %91 : vector<2x128xf32>
    %94 = arith.divf %92, %93 : vector<2x128xf32>
    %95 = vector.extract_strided_slice %88 {offsets = [0, 128], sizes = [2, 128], strides = [1, 1]} : vector<2x512xf32> to vector<2x128xf32>
    %96 = arith.negf %95 : vector<2x128xf32>
    %97 = math.exp %96 : vector<2x128xf32>
    %cst_34 = arith.constant 1.000000e+00 : f32
    %98 = vector.broadcast %cst_34 : f32 to vector<2x128xf32>
    %99 = arith.addf %98, %97 : vector<2x128xf32>
    %100 = arith.divf %98, %99 : vector<2x128xf32>
    %101 = vector.extract_strided_slice %88 {offsets = [0, 256], sizes = [2, 128], strides = [1, 1]} : vector<2x512xf32> to vector<2x128xf32>
    %102 = math.tanh %101 : vector<2x128xf32>
    %103 = vector.extract_strided_slice %88 {offsets = [0, 384], sizes = [2, 128], strides = [1, 1]} : vector<2x512xf32> to vector<2x128xf32>
    %104 = arith.negf %103 : vector<2x128xf32>
    %105 = math.exp %104 : vector<2x128xf32>
    %cst_35 = arith.constant 1.000000e+00 : f32
    %106 = vector.broadcast %cst_35 : f32 to vector<2x128xf32>
    %107 = arith.addf %106, %105 : vector<2x128xf32>
    %108 = arith.divf %106, %107 : vector<2x128xf32>
    %109 = arith.mulf %100, %76 : vector<2x128xf32>
    %110 = arith.mulf %94, %102 : vector<2x128xf32>
    %111 = arith.addf %109, %110 : vector<2x128xf32>
    %112 = math.tanh %111 : vector<2x128xf32>
    %113 = arith.mulf %108, %112 : vector<2x128xf32>
    %c2_i32 = arith.constant 2 : i32
    %114 = vector.broadcast %c2_i32 : i32 to vector<2x1xi32>
    %115 = arith.cmpi eq, %10, %114 : vector<2x1xi32>
    %116 = vector.shape_cast %115 : vector<2x1xi1> to vector<2x1xi1>
    %117 = vector.broadcast %116 : vector<2x1xi1> to vector<2x128xi1>
    %118 = arith.select %117, %113, %83 : vector<2x128xi1>, vector<2x128xf32>
    %c6 = arith.constant 6 : index
    %c0_36 = arith.constant 0 : index
    %119 = vector.load %arg9[%c6, %c0_36] : memref<16x512xf32, #tpu.memory_space<vmem>>, vector<2x512xf32>
    %120 = arith.truncf %113 : vector<2x128xf32> to vector<2x128xbf16>
    %c0_37 = arith.constant 0 : index
    %c0_38 = arith.constant 0 : index
    %121 = vector.load %arg4[%c0_37, %c0_38] : memref<128x512xbf16, #tpu.memory_space<vmem>>, vector<128x512xbf16>
    %cst_39 = arith.constant dense<0.000000e+00> : vector<2x512xf32>
    %122 = tpu.matmul %120, %121, %cst_39 {dimension_numbers = #tpu.dot_dimension_numbers<[1], [0], [0], [1], [0, 0, 1, 1], [], []>} : vector<2x128xbf16>, vector<128x512xbf16>, vector<2x512xf32> -> vector<2x512xf32>
    %123 = arith.addf %119, %122 : vector<2x512xf32>
    %124 = vector.extract_strided_slice %123 {offsets = [0, 0], sizes = [2, 128], strides = [1, 1]} : vector<2x512xf32> to vector<2x128xf32>
    %125 = arith.negf %124 : vector<2x128xf32>
    %126 = math.exp %125 : vector<2x128xf32>
    %cst_40 = arith.constant 1.000000e+00 : f32
    %127 = vector.broadcast %cst_40 : f32 to vector<2x128xf32>
    %128 = arith.addf %127, %126 : vector<2x128xf32>
    %129 = arith.divf %127, %128 : vector<2x128xf32>
    %130 = vector.extract_strided_slice %123 {offsets = [0, 128], sizes = [2, 128], strides = [1, 1]} : vector<2x512xf32> to vector<2x128xf32>
    %131 = arith.negf %130 : vector<2x128xf32>
    %132 = math.exp %131 : vector<2x128xf32>
    %cst_41 = arith.constant 1.000000e+00 : f32
    %133 = vector.broadcast %cst_41 : f32 to vector<2x128xf32>
    %134 = arith.addf %133, %132 : vector<2x128xf32>
    %135 = arith.divf %133, %134 : vector<2x128xf32>
    %136 = vector.extract_strided_slice %123 {offsets = [0, 256], sizes = [2, 128], strides = [1, 1]} : vector<2x512xf32> to vector<2x128xf32>
    %137 = math.tanh %136 : vector<2x128xf32>
    %138 = vector.extract_strided_slice %123 {offsets = [0, 384], sizes = [2, 128], strides = [1, 1]} : vector<2x512xf32> to vector<2x128xf32>
    %139 = arith.negf %138 : vector<2x128xf32>
    %140 = math.exp %139 : vector<2x128xf32>
    %cst_42 = arith.constant 1.000000e+00 : f32
    %141 = vector.broadcast %cst_42 : f32 to vector<2x128xf32>
    %142 = arith.addf %141, %140 : vector<2x128xf32>
    %143 = arith.divf %141, %142 : vector<2x128xf32>
    %144 = arith.mulf %135, %111 : vector<2x128xf32>
    %145 = arith.mulf %129, %137 : vector<2x128xf32>
    %146 = arith.addf %144, %145 : vector<2x128xf32>
    %147 = math.tanh %146 : vector<2x128xf32>
    %148 = arith.mulf %143, %147 : vector<2x128xf32>
    %c3_i32 = arith.constant 3 : i32
    %149 = vector.broadcast %c3_i32 : i32 to vector<2x1xi32>
    %150 = arith.cmpi eq, %10, %149 : vector<2x1xi32>
    %151 = vector.shape_cast %150 : vector<2x1xi1> to vector<2x1xi1>
    %152 = vector.broadcast %151 : vector<2x1xi1> to vector<2x128xi1>
    %153 = arith.select %152, %148, %118 : vector<2x128xi1>, vector<2x128xf32>
    %c8 = arith.constant 8 : index
    %c0_43 = arith.constant 0 : index
    %154 = vector.load %arg9[%c8, %c0_43] : memref<16x512xf32, #tpu.memory_space<vmem>>, vector<2x512xf32>
    %155 = arith.truncf %148 : vector<2x128xf32> to vector<2x128xbf16>
    %c0_44 = arith.constant 0 : index
    %c0_45 = arith.constant 0 : index
    %156 = vector.load %arg4[%c0_44, %c0_45] : memref<128x512xbf16, #tpu.memory_space<vmem>>, vector<128x512xbf16>
    %cst_46 = arith.constant dense<0.000000e+00> : vector<2x512xf32>
    %157 = tpu.matmul %155, %156, %cst_46 {dimension_numbers = #tpu.dot_dimension_numbers<[1], [0], [0], [1], [0, 0, 1, 1], [], []>} : vector<2x128xbf16>, vector<128x512xbf16>, vector<2x512xf32> -> vector<2x512xf32>
    %158 = arith.addf %154, %157 : vector<2x512xf32>
    %159 = vector.extract_strided_slice %158 {offsets = [0, 0], sizes = [2, 128], strides = [1, 1]} : vector<2x512xf32> to vector<2x128xf32>
    %160 = arith.negf %159 : vector<2x128xf32>
    %161 = math.exp %160 : vector<2x128xf32>
    %cst_47 = arith.constant 1.000000e+00 : f32
    %162 = vector.broadcast %cst_47 : f32 to vector<2x128xf32>
    %163 = arith.addf %162, %161 : vector<2x128xf32>
    %164 = arith.divf %162, %163 : vector<2x128xf32>
    %165 = vector.extract_strided_slice %158 {offsets = [0, 128], sizes = [2, 128], strides = [1, 1]} : vector<2x512xf32> to vector<2x128xf32>
    %166 = arith.negf %165 : vector<2x128xf32>
    %167 = math.exp %166 : vector<2x128xf32>
    %cst_48 = arith.constant 1.000000e+00 : f32
    %168 = vector.broadcast %cst_48 : f32 to vector<2x128xf32>
    %169 = arith.addf %168, %167 : vector<2x128xf32>
    %170 = arith.divf %168, %169 : vector<2x128xf32>
    %171 = vector.extract_strided_slice %158 {offsets = [0, 256], sizes = [2, 128], strides = [1, 1]} : vector<2x512xf32> to vector<2x128xf32>
    %172 = math.tanh %171 : vector<2x128xf32>
    %173 = vector.extract_strided_slice %158 {offsets = [0, 384], sizes = [2, 128], strides = [1, 1]} : vector<2x512xf32> to vector<2x128xf32>
    %174 = arith.negf %173 : vector<2x128xf32>
    %175 = math.exp %174 : vector<2x128xf32>
    %cst_49 = arith.constant 1.000000e+00 : f32
    %176 = vector.broadcast %cst_49 : f32 to vector<2x128xf32>
    %177 = arith.addf %176, %175 : vector<2x128xf32>
    %178 = arith.divf %176, %177 : vector<2x128xf32>
    %179 = arith.mulf %170, %146 : vector<2x128xf32>
    %180 = arith.mulf %164, %172 : vector<2x128xf32>
    %181 = arith.addf %179, %180 : vector<2x128xf32>
    %182 = math.tanh %181 : vector<2x128xf32>
    %183 = arith.mulf %178, %182 : vector<2x128xf32>
    %c4_i32 = arith.constant 4 : i32
    %184 = vector.broadcast %c4_i32 : i32 to vector<2x1xi32>
    %185 = arith.cmpi eq, %10, %184 : vector<2x1xi32>
    %186 = vector.shape_cast %185 : vector<2x1xi1> to vector<2x1xi1>
    %187 = vector.broadcast %186 : vector<2x1xi1> to vector<2x128xi1>
    %188 = arith.select %187, %183, %153 : vector<2x128xi1>, vector<2x128xf32>
    %c10 = arith.constant 10 : index
    %c0_50 = arith.constant 0 : index
    %189 = vector.load %arg9[%c10, %c0_50] : memref<16x512xf32, #tpu.memory_space<vmem>>, vector<2x512xf32>
    %190 = arith.truncf %183 : vector<2x128xf32> to vector<2x128xbf16>
    %c0_51 = arith.constant 0 : index
    %c0_52 = arith.constant 0 : index
    %191 = vector.load %arg4[%c0_51, %c0_52] : memref<128x512xbf16, #tpu.memory_space<vmem>>, vector<128x512xbf16>
    %cst_53 = arith.constant dense<0.000000e+00> : vector<2x512xf32>
    %192 = tpu.matmul %190, %191, %cst_53 {dimension_numbers = #tpu.dot_dimension_numbers<[1], [0], [0], [1], [0, 0, 1, 1], [], []>} : vector<2x128xbf16>, vector<128x512xbf16>, vector<2x512xf32> -> vector<2x512xf32>
    %193 = arith.addf %189, %192 : vector<2x512xf32>
    %194 = vector.extract_strided_slice %193 {offsets = [0, 0], sizes = [2, 128], strides = [1, 1]} : vector<2x512xf32> to vector<2x128xf32>
    %195 = arith.negf %194 : vector<2x128xf32>
    %196 = math.exp %195 : vector<2x128xf32>
    %cst_54 = arith.constant 1.000000e+00 : f32
    %197 = vector.broadcast %cst_54 : f32 to vector<2x128xf32>
    %198 = arith.addf %197, %196 : vector<2x128xf32>
    %199 = arith.divf %197, %198 : vector<2x128xf32>
    %200 = vector.extract_strided_slice %193 {offsets = [0, 128], sizes = [2, 128], strides = [1, 1]} : vector<2x512xf32> to vector<2x128xf32>
    %201 = arith.negf %200 : vector<2x128xf32>
    %202 = math.exp %201 : vector<2x128xf32>
    %cst_55 = arith.constant 1.000000e+00 : f32
    %203 = vector.broadcast %cst_55 : f32 to vector<2x128xf32>
    %204 = arith.addf %203, %202 : vector<2x128xf32>
    %205 = arith.divf %203, %204 : vector<2x128xf32>
    %206 = vector.extract_strided_slice %193 {offsets = [0, 256], sizes = [2, 128], strides = [1, 1]} : vector<2x512xf32> to vector<2x128xf32>
    %207 = math.tanh %206 : vector<2x128xf32>
    %208 = vector.extract_strided_slice %193 {offsets = [0, 384], sizes = [2, 128], strides = [1, 1]} : vector<2x512xf32> to vector<2x128xf32>
    %209 = arith.negf %208 : vector<2x128xf32>
    %210 = math.exp %209 : vector<2x128xf32>
    %cst_56 = arith.constant 1.000000e+00 : f32
    %211 = vector.broadcast %cst_56 : f32 to vector<2x128xf32>
    %212 = arith.addf %211, %210 : vector<2x128xf32>
    %213 = arith.divf %211, %212 : vector<2x128xf32>
    %214 = arith.mulf %205, %181 : vector<2x128xf32>
    %215 = arith.mulf %199, %207 : vector<2x128xf32>
    %216 = arith.addf %214, %215 : vector<2x128xf32>
    %217 = math.tanh %216 : vector<2x128xf32>
    %218 = arith.mulf %213, %217 : vector<2x128xf32>
    %c5_i32 = arith.constant 5 : i32
    %219 = vector.broadcast %c5_i32 : i32 to vector<2x1xi32>
    %220 = arith.cmpi eq, %10, %219 : vector<2x1xi32>
    %221 = vector.shape_cast %220 : vector<2x1xi1> to vector<2x1xi1>
    %222 = vector.broadcast %221 : vector<2x1xi1> to vector<2x128xi1>
    %223 = arith.select %222, %218, %188 : vector<2x128xi1>, vector<2x128xf32>
    %c12 = arith.constant 12 : index
    %c0_57 = arith.constant 0 : index
    %224 = vector.load %arg9[%c12, %c0_57] : memref<16x512xf32, #tpu.memory_space<vmem>>, vector<2x512xf32>
    %225 = arith.truncf %218 : vector<2x128xf32> to vector<2x128xbf16>
    %c0_58 = arith.constant 0 : index
    %c0_59 = arith.constant 0 : index
    %226 = vector.load %arg4[%c0_58, %c0_59] : memref<128x512xbf16, #tpu.memory_space<vmem>>, vector<128x512xbf16>
    %cst_60 = arith.constant dense<0.000000e+00> : vector<2x512xf32>
    %227 = tpu.matmul %225, %226, %cst_60 {dimension_numbers = #tpu.dot_dimension_numbers<[1], [0], [0], [1], [0, 0, 1, 1], [], []>} : vector<2x128xbf16>, vector<128x512xbf16>, vector<2x512xf32> -> vector<2x512xf32>
    %228 = arith.addf %224, %227 : vector<2x512xf32>
    %229 = vector.extract_strided_slice %228 {offsets = [0, 0], sizes = [2, 128], strides = [1, 1]} : vector<2x512xf32> to vector<2x128xf32>
    %230 = arith.negf %229 : vector<2x128xf32>
    %231 = math.exp %230 : vector<2x128xf32>
    %cst_61 = arith.constant 1.000000e+00 : f32
    %232 = vector.broadcast %cst_61 : f32 to vector<2x128xf32>
    %233 = arith.addf %232, %231 : vector<2x128xf32>
    %234 = arith.divf %232, %233 : vector<2x128xf32>
    %235 = vector.extract_strided_slice %228 {offsets = [0, 128], sizes = [2, 128], strides = [1, 1]} : vector<2x512xf32> to vector<2x128xf32>
    %236 = arith.negf %235 : vector<2x128xf32>
    %237 = math.exp %236 : vector<2x128xf32>
    %cst_62 = arith.constant 1.000000e+00 : f32
    %238 = vector.broadcast %cst_62 : f32 to vector<2x128xf32>
    %239 = arith.addf %238, %237 : vector<2x128xf32>
    %240 = arith.divf %238, %239 : vector<2x128xf32>
    %241 = vector.extract_strided_slice %228 {offsets = [0, 256], sizes = [2, 128], strides = [1, 1]} : vector<2x512xf32> to vector<2x128xf32>
    %242 = math.tanh %241 : vector<2x128xf32>
    %243 = vector.extract_strided_slice %228 {offsets = [0, 384], sizes = [2, 128], strides = [1, 1]} : vector<2x512xf32> to vector<2x128xf32>
    %244 = arith.negf %243 : vector<2x128xf32>
    %245 = math.exp %244 : vector<2x128xf32>
    %cst_63 = arith.constant 1.000000e+00 : f32
    %246 = vector.broadcast %cst_63 : f32 to vector<2x128xf32>
    %247 = arith.addf %246, %245 : vector<2x128xf32>
    %248 = arith.divf %246, %247 : vector<2x128xf32>
    %249 = arith.mulf %240, %216 : vector<2x128xf32>
    %250 = arith.mulf %234, %242 : vector<2x128xf32>
    %251 = arith.addf %249, %250 : vector<2x128xf32>
    %252 = math.tanh %251 : vector<2x128xf32>
    %253 = arith.mulf %248, %252 : vector<2x128xf32>
    %c6_i32 = arith.constant 6 : i32
    %254 = vector.broadcast %c6_i32 : i32 to vector<2x1xi32>
    %255 = arith.cmpi eq, %10, %254 : vector<2x1xi32>
    %256 = vector.shape_cast %255 : vector<2x1xi1> to vector<2x1xi1>
    %257 = vector.broadcast %256 : vector<2x1xi1> to vector<2x128xi1>
    %258 = arith.select %257, %253, %223 : vector<2x128xi1>, vector<2x128xf32>
    %c14 = arith.constant 14 : index
    %c0_64 = arith.constant 0 : index
    %259 = vector.load %arg9[%c14, %c0_64] : memref<16x512xf32, #tpu.memory_space<vmem>>, vector<2x512xf32>
    %260 = arith.truncf %253 : vector<2x128xf32> to vector<2x128xbf16>
    %c0_65 = arith.constant 0 : index
    %c0_66 = arith.constant 0 : index
    %261 = vector.load %arg4[%c0_65, %c0_66] : memref<128x512xbf16, #tpu.memory_space<vmem>>, vector<128x512xbf16>
    %cst_67 = arith.constant dense<0.000000e+00> : vector<2x512xf32>
    %262 = tpu.matmul %260, %261, %cst_67 {dimension_numbers = #tpu.dot_dimension_numbers<[1], [0], [0], [1], [0, 0, 1, 1], [], []>} : vector<2x128xbf16>, vector<128x512xbf16>, vector<2x512xf32> -> vector<2x512xf32>
    %263 = arith.addf %259, %262 : vector<2x512xf32>
    %264 = vector.extract_strided_slice %263 {offsets = [0, 0], sizes = [2, 128], strides = [1, 1]} : vector<2x512xf32> to vector<2x128xf32>
    %265 = arith.negf %264 : vector<2x128xf32>
    %266 = math.exp %265 : vector<2x128xf32>
    %cst_68 = arith.constant 1.000000e+00 : f32
    %267 = vector.broadcast %cst_68 : f32 to vector<2x128xf32>
    %268 = arith.addf %267, %266 : vector<2x128xf32>
    %269 = arith.divf %267, %268 : vector<2x128xf32>
    %270 = vector.extract_strided_slice %263 {offsets = [0, 128], sizes = [2, 128], strides = [1, 1]} : vector<2x512xf32> to vector<2x128xf32>
    %271 = arith.negf %270 : vector<2x128xf32>
    %272 = math.exp %271 : vector<2x128xf32>
    %cst_69 = arith.constant 1.000000e+00 : f32
    %273 = vector.broadcast %cst_69 : f32 to vector<2x128xf32>
    %274 = arith.addf %273, %272 : vector<2x128xf32>
    %275 = arith.divf %273, %274 : vector<2x128xf32>
    %276 = vector.extract_strided_slice %263 {offsets = [0, 256], sizes = [2, 128], strides = [1, 1]} : vector<2x512xf32> to vector<2x128xf32>
    %277 = math.tanh %276 : vector<2x128xf32>
    %278 = vector.extract_strided_slice %263 {offsets = [0, 384], sizes = [2, 128], strides = [1, 1]} : vector<2x512xf32> to vector<2x128xf32>
    %279 = arith.negf %278 : vector<2x128xf32>
    %280 = math.exp %279 : vector<2x128xf32>
    %cst_70 = arith.constant 1.000000e+00 : f32
    %281 = vector.broadcast %cst_70 : f32 to vector<2x128xf32>
    %282 = arith.addf %281, %280 : vector<2x128xf32>
    %283 = arith.divf %281, %282 : vector<2x128xf32>
    %284 = arith.mulf %275, %251 : vector<2x128xf32>
    %285 = arith.mulf %269, %277 : vector<2x128xf32>
    %286 = arith.addf %284, %285 : vector<2x128xf32>
    %287 = math.tanh %286 : vector<2x128xf32>
    %288 = arith.mulf %283, %287 : vector<2x128xf32>
    %c7_i32 = arith.constant 7 : i32
    %289 = vector.broadcast %c7_i32 : i32 to vector<2x1xi32>
    %290 = arith.cmpi eq, %10, %289 : vector<2x1xi32>
    %291 = vector.shape_cast %290 : vector<2x1xi1> to vector<2x1xi1>
    %292 = vector.broadcast %291 : vector<2x1xi1> to vector<2x128xi1>
    %293 = arith.select %292, %288, %258 : vector<2x128xi1>, vector<2x128xf32>
    %c0_71 = arith.constant 0 : index
    %c0_72 = arith.constant 0 : index
    %294 = vector.load %arg6[%c0_71, %c0_72] : memref<128x2xf32, #tpu.memory_space<vmem>>, vector<128x2xf32>
    %cst_73 = arith.constant dense<0.000000e+00> : vector<2x2xf32>
    %295 = tpu.matmul %293, %294, %cst_73 {dimension_numbers = #tpu.dot_dimension_numbers<[1], [0], [0], [1], [0, 0, 1, 1], [], []>} : vector<2x128xf32>, vector<128x2xf32>, vector<2x2xf32> -> vector<2x2xf32>
    %c0_74 = arith.constant 0 : index
    %c0_75 = arith.constant 0 : index
    %296 = vector.load %arg7[%c0_74, %c0_75] : memref<1x2xf32, #tpu.memory_space<vmem>>, vector<1x2xf32>
    %297 = vector.broadcast %296 : vector<1x2xf32> to vector<2x2xf32>
    %298 = arith.addf %295, %297 : vector<2x2xf32>
    %c0_76 = arith.constant 0 : index
    %c0_77 = arith.constant 0 : index
    %299 = vector.load %arg8[%c0_76, %c0_77] : memref<2x2xf32, #tpu.memory_space<vmem>>, vector<2x2xf32>
    tpu.vector_store %arg8[%c0_76, %c0_77], %298 {strides = array<i32>} : memref<2x2xf32, #tpu.memory_space<vmem>>, vector<2x2xf32>,
    return
  }
  func.func @transform_0(%arg0: i32) -> (i32, i32, i32) {
    %c0_i32 = arith.constant 0 : i32
    %c0_i32_0 = arith.constant 0 : i32
    %c0_i32_1 = arith.constant 0 : i32
    return %arg0, %c0_i32, %c0_i32_0 : i32, i32, i32
  }
  func.func @transform_1(%arg0: i32) -> (i32, i32, i32) {
    %c0_i32 = arith.constant 0 : i32
    %c0_i32_0 = arith.constant 0 : i32
    %c0_i32_1 = arith.constant 0 : i32
    return %arg0, %c0_i32, %c0_i32_0 : i32, i32, i32
  }
  func.func @transform_2(%arg0: i32) -> (i32, i32) {
    %c0_i32 = arith.constant 0 : i32
    %c0_i32_0 = arith.constant 0 : i32
    %c0_i32_1 = arith.constant 0 : i32
    return %c0_i32, %c0_i32_0 : i32, i32
  }
  func.func @transform_3(%arg0: i32) -> (i32, i32) {
    %c0_i32 = arith.constant 0 : i32
    %c0_i32_0 = arith.constant 0 : i32
    %c0_i32_1 = arith.constant 0 : i32
    return %c0_i32, %c0_i32_0 : i32, i32
  }
  func.func @transform_4(%arg0: i32) -> (i32, i32) {
    %c0_i32 = arith.constant 0 : i32
    %c0_i32_0 = arith.constant 0 : i32
    %c0_i32_1 = arith.constant 0 : i32
    return %c0_i32, %c0_i32_0 : i32, i32
  }
  func.func @transform_5(%arg0: i32) -> (i32, i32) {
    %c0_i32 = arith.constant 0 : i32
    %c0_i32_0 = arith.constant 0 : i32
    %c0_i32_1 = arith.constant 0 : i32
    return %c0_i32, %c0_i32_0 : i32, i32
  }
  func.func @transform_6(%arg0: i32) -> (i32, i32) {
    %c0_i32 = arith.constant 0 : i32
    %c0_i32_0 = arith.constant 0 : i32
    %c0_i32_1 = arith.constant 0 : i32
    return %c0_i32, %c0_i32_0 : i32, i32
  }
  func.func @transform_7(%arg0: i32) -> (i32, i32) {
    %c0_i32 = arith.constant 0 : i32
    %c0_i32_0 = arith.constant 0 : i32
    return %arg0, %c0_i32 : i32, i32
  }
}

</mosaic_0001>

<llo_original>
// kernel: forward.1
$region0: #{forward.1}
  #allocation0 [shape = 'u32[]', space=smem, size = 0x4, offset = 0x4, fixed_abs, tag = 'smem constant byte address 0x4 - core index']
  #allocation1 [shape = 'u32[144,128]{1,0:T(1,128)}', space=vmem, size = 0x12000, scoped, tag = 'internal scratch']
  #allocation2 [shape = 'f32[16,512]{1,0:T(8,128)}', space=vmem, size = 0x8000, scoped, tag = 'scratch operand']
  %s0 = inlined_call_operand.vmem [shape: f32[1,16,32], index: 0, kind: input, shape index: {}]
  %s1 = inlined_call_operand.vmem [shape: s32[1,2,1], index: 1, kind: input, shape index: {}]
  %s2 = inlined_call_operand.vmem [shape: bf16[32,512], index: 2, kind: input, shape index: {}]
  %s3 = inlined_call_operand.vmem [shape: bf16[128,512], index: 3, kind: input, shape index: {}]
  %s4 = inlined_call_operand.vmem [shape: f32[1,512], index: 4, kind: input, shape index: {}]
  %s5 = inlined_call_operand.vmem [shape: f32[128,2], index: 5, kind: input, shape index: {}]
  %s6 = inlined_call_operand.vmem [shape: f32[1,2], index: 6, kind: input, shape index: {}]
  %s7 = inlined_call_operand.hbm [shape: f32[2,2], index: 7, kind: output, shape index: {}]
  %s8 = sld [smem:[#allocation0]]
  $region38: #{forward.1} parent=0
    _
  %s10 = ssub.s32 1, %s8
  %s11 = scalar_select 0, %s10, %s8
  $region1: #{forward.1} parent=0
    #allocation3 [shape = 'u8[1024]{0}', space=vmem, size = 0x400, scoped, tag = 'output window, operand 0, single buffered']
    #allocation4 [shape = 's32[1]{0}', space=sflag, size = 0x4, scoped, tag = 'scoped memory for forward.1']
    %12 = vsyncpa [#allocation4], 0
    // Predicated region
    $region2: #{forward.1} parent=1 // pred_check
      _
    $region3: #{forward.1} parent=1 // pred_check_branch
      %14 = sbr.rel (0) target = $region5
    $region4: #{forward.1} parent=1 // pred_region
      _
    $region5: #{forward.1} parent=1 // pred_fallthru
      _
    // Predicated region
    $region6: #{forward.1} parent=1 // pred_check
      _
    $region7: #{forward.1} parent=1 // pred_check_branch
      %16 = sbr.rel (0) target = $region9
    $region8: #{forward.1} parent=1 // pred_region
      _
    $region9: #{forward.1} parent=1 // pred_fallthru
      _
    // Predicated region
    $region10: #{forward.1} parent=1 // pred_check
      _
    $region11: #{forward.1} parent=1 // pred_check_branch
      %18 = sbr.rel (0) target = $region13
    $region12: #{forward.1} parent=1 // pred_region
      _
    $region13: #{forward.1} parent=1 // pred_fallthru
      _
    // Predicated region
    $region14: #{forward.1} parent=1 // pred_check
      _
    $region15: #{forward.1} parent=1 // pred_check_branch
      %20 = sbr.rel (0) target = $region17
    $region16: #{forward.1} parent=1 // pred_region
      _
    $region17: #{forward.1} parent=1 // pred_fallthru
      _
    // Predicated region
    $region18: #{forward.1} parent=1 // pred_check
      _
    $region19: #{forward.1} parent=1 // pred_check_branch
      %22 = sbr.rel (0) target = $region21
    $region20: #{forward.1} parent=1 // pred_region
      _
    $region21: #{forward.1} parent=1 // pred_fallthru
      _
    // Predicated region
    $region22: #{forward.1} parent=1 // pred_check
      _
    $region23: #{forward.1} parent=1 // pred_check_branch
      %24 = sbr.rel (0) target = $region25
    $region24: #{forward.1} parent=1 // pred_region
      _
    $region25: #{forward.1} parent=1 // pred_fallthru
      _
    // Predicated region
    $region26: #{forward.1} parent=1 // pred_check
      _
    $region27: #{forward.1} parent=1 // pred_check_branch
      %26 = sbr.rel (0) target = $region29
    $region28: #{forward.1} parent=1 // pred_region
      _
    $region29: #{forward.1} parent=1 // pred_fallthru
      _
    %v28 = vld [vmem:[%s0] sm:$0xff]
    %v29 = vld [vmem:[%s0 + $0x8] sm:$0xff]
    %v30 = vpack.c.bf16 %v29, %v28
    %v31 = vld [vmem:[%s2] sm:$0xff]
    %v32 = vld [vmem:[%s2 + $0x8] sm:$0xff]
    %v33 = vld [vmem:[%s2 + $0x10] sm:$0xff]
    %v34 = vld [vmem:[%s2 + $0x18] sm:$0xff]
    %v35 = vld [vmem:[%s2 + $0x20] sm:$0xff]
    %v36 = vld [vmem:[%s2 + $0x28] sm:$0xff]
    %v37 = vld [vmem:[%s2 + $0x30] sm:$0xff]
    %v38 = vld [vmem:[%s2 + $0x38] sm:$0xff]
    %v39 = vld [vmem:[%s4] sm:$0xf]
    %v41 = vlaneseq
    %v42 = vshrl.u32 %v41, 7
    %v43 = vsub.s32 0, %v42
    %v44 = vrot.slane %v39, %v43
    %v45 = vlaneseq
    %v46 = vshrl.u32 %v45, 7
    %v47 = vsub.s32 1, %v46
    %v48 = vrot.slane %v39, %v47
    %v49 = vlaneseq
    %v50 = vshrl.u32 %v49, 7
    %v51 = vsub.s32 2, %v50
    %v52 = vrot.slane %v39, %v51
    %v53 = vlaneseq
    %v54 = vshrl.u32 %v53, 7
    %v55 = vsub.s32 3, %v54
    %v56 = vrot.slane %v39, %v55
    %v69 = vunpack.c.l.b16 %v31
    %v70 = vunpack.c.h.b16 %v31
    %v71 = vunpack.c.l.b16 %v32
    %v72 = vunpack.c.h.b16 %v32
    %v73 = vunpack.c.l.b16 %v33
    %v74 = vunpack.c.h.b16 %v33
    %v75 = vunpack.c.l.b16 %v34
    %v76 = vunpack.c.h.b16 %v34
    %v77 = vunpack.c.l.b16 %v35
    %v78 = vunpack.c.h.b16 %v35
    %v79 = vunpack.c.l.b16 %v36
    %v80 = vunpack.c.h.b16 %v36
    %v81 = vunpack.c.l.b16 %v37
    %v82 = vunpack.c.h.b16 %v37
    %v83 = vunpack.c.l.b16 %v38
    %v84 = vunpack.c.h.b16 %v38
    %v85 = vpack.c.b16 %v73, %v69
    %v86 = vpack.c.b16 %v74, %v70
    %v87 = vpack.c.b16 %v75, %v71
    %v88 = vpack.c.b16 %v76, %v72
    %v89 = vpack.c.b16 %v81, %v77
    %v90 = vpack.c.b16 %v82, %v78
    %v91 = vpack.c.b16 %v83, %v79
    %v92 = vpack.c.b16 %v84, %v80
    %vm101 = vcmask 261120
    %v103 = vsel %vm101, %v30, 0
    %105 = vmatprep.subr.bf16.mxu0 %v86
    %106 = vmatpush1.bf16.msra.mxu0 %v85
    %107 = vmatprep.subr.bf16.mxu0 %v90
    %108 = vmatpush1.bf16.msra.mxu0 %v89
    %109 = vmatprep.subr.bf16.mxu0 0
    %110 = vmatpush1.bf16.msra.mxu0 0
    %111 = vmatprep.subr.bf16.mxu0 0
    %112 = vmatpush1.bf16.msra.mxu0 0
    %113 = vmatprep.subr.bf16.mxu0 0
    %114 = vmatpush1.bf16.msra.mxu0 0
    %115 = vmatprep.subr.bf16.mxu0 0
    %116 = vmatpush1.bf16.msra.mxu0 0
    %117 = vmatprep.subr.bf16.mxu0 0
    %118 = vmatpush1.bf16.msra.mxu0 0
    %119 = vmatprep.subr.bf16.mxu0 0
    %120 = vmatpush1.bf16.msra.mxu0 0
    %121 = vmatprep.subr.bf16.mxu0 0
    %122 = vmatpush1.bf16.msra.mxu0 0
    %123 = vmatprep.subr.bf16.mxu0 0
    %124 = vmatpush1.bf16.msra.mxu0 0
    %125 = vmatprep.subr.bf16.mxu0 0
    %126 = vmatpush1.bf16.msra.mxu0 0
    %127 = vmatprep.subr.bf16.mxu0 0
    %128 = vmatpush1.bf16.msra.mxu0 0
    %129 = vmatprep.subr.bf16.mxu0 0
    %130 = vmatpush1.bf16.msra.mxu0 0
    %131 = vmatprep.subr.bf16.mxu0 0
    %132 = vmatpush1.bf16.msra.mxu0 0
    %133 = vmatprep.subr.bf16.mxu0 0
    %134 = vmatpush1.bf16.msra.mxu0 0
    %135 = vmatprep.subr.bf16.mxu0 0
    %136 = vmatpush1.bf16.msra.mxu0 0
    %137 = vmatprep.mubr.bf16.mxu0 0
    %138 = vmatmul.mubr.bf16.gmra.mrb[0].mxu0 %v103
    %v139 = vpop.f32.mrb[0].mxu0
    %v140 = vadd.f32 %v44, %v139
    %v141 = vpop.f32.mrb[0].mxu0
    %v142 = vadd.f32 %v48, %v141
    %v143 = vpop.f32.mrb[0].mxu0
    %v144 = vadd.f32 %v44, %v143
    %v145 = vpop.f32.mrb[0].mxu0
    %v146 = vadd.f32 %v48, %v145
    %147 = vdwg.mxu0
    %148 = vmatprep.subr.bf16.mxu0 %v88
    %149 = vmatpush1.bf16.msra.mxu0 %v87
    %150 = vmatprep.subr.bf16.mxu0 %v92
    %151 = vmatpush1.bf16.msra.mxu0 %v91
    %152 = vmatprep.subr.bf16.mxu0 0
    %153 = vmatpush1.bf16.msra.mxu0 0
    %154 = vmatprep.subr.bf16.mxu0 0
    %155 = vmatpush1.bf16.msra.mxu0 0
    %156 = vmatprep.subr.bf16.mxu0 0
    %157 = vmatpush1.bf16.msra.mxu0 0
    %158 = vmatprep.subr.bf16.mxu0 0
    %159 = vmatpush1.bf16.msra.mxu0 0
    %160 = vmatprep.subr.bf16.mxu0 0
    %161 = vmatpush1.bf16.msra.mxu0 0
    %162 = vmatprep.subr.bf16.mxu0 0
    %163 = vmatpush1.bf16.msra.mxu0 0
    %164 = vmatprep.subr.bf16.mxu0 0
    %165 = vmatpush1.bf16.msra.mxu0 0
    %166 = vmatprep.subr.bf16.mxu0 0
    %167 = vmatpush1.bf16.msra.mxu0 0
    %168 = vmatprep.subr.bf16.mxu0 0
    %169 = vmatpush1.bf16.msra.mxu0 0
    %170 = vmatprep.subr.bf16.mxu0 0
    %171 = vmatpush1.bf16.msra.mxu0 0
    %172 = vmatprep.subr.bf16.mxu0 0
    %173 = vmatpush1.bf16.msra.mxu0 0
    %174 = vmatprep.subr.bf16.mxu0 0
    %175 = vmatpush1.bf16.msra.mxu0 0
    %176 = vmatprep.subr.bf16.mxu0 0
    %177 = vmatpush1.bf16.msra.mxu0 0
    %178 = vmatprep.subr.bf16.mxu0 0
    %179 = vmatpush1.bf16.msra.mxu0 0
    %180 = vmatprep.mubr.bf16.mxu0 0
    %181 = vmatmul.mubr.bf16.gmra.mrb[0].mxu0 %v103
    %v182 = vpop.f32.mrb[0].mxu0
    %v183 = vadd.f32 %v52, %v182
    %v184 = vpop.f32.mrb[0].mxu0
    %v185 = vadd.f32 %v56, %v184
    %v186 = vpop.f32.mrb[0].mxu0
    %v187 = vadd.f32 %v52, %v186
    %v188 = vpop.f32.mrb[0].mxu0
    %v189 = vadd.f32 %v56, %v188
    %190 = vdwg.mxu0
    %191 = vst [vmem:[#allocation2] sm:$0xff] %v140
    %192 = vst [vmem:[#allocation2 + $0x8] sm:$0xff] %v142
    %193 = vst [vmem:[#allocation2 + $0x10] sm:$0xff] %v183
    %194 = vst [vmem:[#allocation2 + $0x18] sm:$0xff] %v185
    %195 = vst [vmem:[#allocation2 + $0x20] sm:$0xff] %v144
    %196 = vst [vmem:[#allocation2 + $0x28] sm:$0xff] %v146
    %197 = vst [vmem:[#allocation2 + $0x30] sm:$0xff] %v187
    %198 = vst [vmem:[#allocation2 + $0x38] sm:$0xff] %v189
    %v199 = vld [vmem:[%s1] sm:$0x3]
    %v200 = vld [vmem:[#allocation2] sm:$0x3]
    %v201 = vld [vmem:[#allocation2 + $0x8] sm:$0x3]
    %v202 = vld [vmem:[#allocation2 + $0x10] sm:$0x3]
    %v203 = vld [vmem:[#allocation2 + $0x18] sm:$0x3]
    %v204 = vld [vmem:[%s3] sm:$0xff]
    %v205 = vld [vmem:[%s3 + $0x8] sm:$0xff]
    %v206 = vld [vmem:[%s3 + $0x10] sm:$0xff]
    %v207 = vld [vmem:[%s3 + $0x18] sm:$0xff]
    %v208 = vld [vmem:[%s3 + $0x20] sm:$0xff]
    %v209 = vld [vmem:[%s3 + $0x28] sm:$0xff]
    %v210 = vld [vmem:[%s3 + $0x30] sm:$0xff]
    %v211 = vld [vmem:[%s3 + $0x38] sm:$0xff]
    %v212 = vld [vmem:[%s3 + $0x40] sm:$0xff]
    %v213 = vld [vmem:[%s3 + $0x48] sm:$0xff]
    %v214 = vld [vmem:[%s3 + $0x50] sm:$0xff]
    %v215 = vld [vmem:[%s3 + $0x58] sm:$0xff]
    %v216 = vld [vmem:[%s3 + $0x60] sm:$0xff]
    %v217 = vld [vmem:[%s3 + $0x68] sm:$0xff]
    %v218 = vld [vmem:[%s3 + $0x70] sm:$0xff]
    %v219 = vld [vmem:[%s3 + $0x78] sm:$0xff]
    %v220 = vld [vmem:[%s3 + $0x80] sm:$0xff]
    %v221 = vld [vmem:[%s3 + $0x88] sm:$0xff]
    %v222 = vld [vmem:[%s3 + $0x90] sm:$0xff]
    %v223 = vld [vmem:[%s3 + $0x98] sm:$0xff]
    %v224 = vld [vmem:[%s3 + $0xa0] sm:$0xff]
    %v225 = vld [vmem:[%s3 + $0xa8] sm:$0xff]
    %v226 = vld [vmem:[%s3 + $0xb0] sm:$0xff]
    %v227 = vld [vmem:[%s3 + $0xb8] sm:$0xff]
    %v228 = vld [vmem:[%s3 + $0xc0] sm:$0xff]
    %v229 = vld [vmem:[%s3 + $0xc8] sm:$0xff]
    %v230 = vld [vmem:[%s3 + $0xd0] sm:$0xff]
    %v231 = vld [vmem:[%s3 + $0xd8] sm:$0xff]
    %v232 = vld [vmem:[%s3 + $0xe0] sm:$0xff]
    %v233 = vld [vmem:[%s3 + $0xe8] sm:$0xff]
    %v234 = vld [vmem:[%s3 + $0xf0] sm:$0xff]
    %v235 = vld [vmem:[%s3 + $0xf8] sm:$0xff]
    %v268 = vunpack.c.l.b16 %v204
    %v269 = vunpack.c.h.b16 %v204
    %v270 = vunpack.c.l.b16 %v205
    %v271 = vunpack.c.h.b16 %v205
    %v272 = vunpack.c.l.b16 %v206
    %v273 = vunpack.c.h.b16 %v206
    %v274 = vunpack.c.l.b16 %v207
    %v275 = vunpack.c.h.b16 %v207
    %v276 = vunpack.c.l.b16 %v208
    %v277 = vunpack.c.h.b16 %v208
    %v278 = vunpack.c.l.b16 %v209
    %v279 = vunpack.c.h.b16 %v209
    %v280 = vunpack.c.l.b16 %v210
    %v281 = vunpack.c.h.b16 %v210
    %v282 = vunpack.c.l.b16 %v211
    %v283 = vunpack.c.h.b16 %v211
    %v284 = vunpack.c.l.b16 %v212
    %v285 = vunpack.c.h.b16 %v212
    %v286 = vunpack.c.l.b16 %v213
    %v287 = vunpack.c.h.b16 %v213
    %v288 = vunpack.c.l.b16 %v214
    %v289 = vunpack.c.h.b16 %v214
    %v290 = vunpack.c.l.b16 %v215
    %v291 = vunpack.c.h.b16 %v215
    %v292 = vunpack.c.l.b16 %v216
    %v293 = vunpack.c.h.b16 %v216
    %v294 = vunpack.c.l.b16 %v217
    %v295 = vunpack.c.h.b16 %v217
    %v296 = vunpack.c.l.b16 %v218
    %v297 = vunpack.c.h.b16 %v218
    %v298 = vunpack.c.l.b16 %v219
    %v299 = vunpack.c.h.b16 %v219
    %v300 = vunpack.c.l.b16 %v220
    %v301 = vunpack.c.h.b16 %v220
    %v302 = vunpack.c.l.b16 %v221
    %v303 = vunpack.c.h.b16 %v221
    %v304 = vunpack.c.l.b16 %v222
    %v305 = vunpack.c.h.b16 %v222
    %v306 = vunpack.c.l.b16 %v223
    %v307 = vunpack.c.h.b16 %v223
    %v308 = vunpack.c.l.b16 %v224
    %v309 = vunpack.c.h.b16 %v224
    %v310 = vunpack.c.l.b16 %v225
    %v311 = vunpack.c.h.b16 %v225
    %v312 = vunpack.c.l.b16 %v226
    %v313 = vunpack.c.h.b16 %v226
    %v314 = vunpack.c.l.b16 %v227
    %v315 = vunpack.c.h.b16 %v227
    %v316 = vunpack.c.l.b16 %v228
    %v317 = vunpack.c.h.b16 %v228
    %v318 = vunpack.c.l.b16 %v229
    %v319 = vunpack.c.h.b16 %v229
    %v320 = vunpack.c.l.b16 %v230
    %v321 = vunpack.c.h.b16 %v230
    %v322 = vunpack.c.l.b16 %v231
    %v323 = vunpack.c.h.b16 %v231
    %v324 = vunpack.c.l.b16 %v232
    %v325 = vunpack.c.h.b16 %v232
    %v326 = vunpack.c.l.b16 %v233
    %v327 = vunpack.c.h.b16 %v233
    %v328 = vunpack.c.l.b16 %v234
    %v329 = vunpack.c.h.b16 %v234
    %v330 = vunpack.c.l.b16 %v235
    %v331 = vunpack.c.h.b16 %v235
    %v332 = vpack.c.b16 %v272, %v268
    %v333 = vpack.c.b16 %v273, %v269
    %v334 = vpack.c.b16 %v274, %v270
    %v335 = vpack.c.b16 %v275, %v271
    %v336 = vpack.c.b16 %v280, %v276
    %v337 = vpack.c.b16 %v281, %v277
    %v338 = vpack.c.b16 %v282, %v278
    %v339 = vpack.c.b16 %v283, %v279
    %v340 = vpack.c.b16 %v288, %v284
    %v341 = vpack.c.b16 %v289, %v285
    %v342 = vpack.c.b16 %v290, %v286
    %v343 = vpack.c.b16 %v291, %v287
    %v344 = vpack.c.b16 %v296, %v292
    %v345 = vpack.c.b16 %v297, %v293
    %v346 = vpack.c.b16 %v298, %v294
    %v347 = vpack.c.b16 %v299, %v295
    %v348 = vpack.c.b16 %v304, %v300
    %v349 = vpack.c.b16 %v305, %v301
    %v350 = vpack.c.b16 %v306, %v302
    %v351 = vpack.c.b16 %v307, %v303
    %v352 = vpack.c.b16 %v312, %v308
    %v353 = vpack.c.b16 %v313, %v309
    %v354 = vpack.c.b16 %v314, %v310
    %v355 = vpack.c.b16 %v315, %v311
    %v356 = vpack.c.b16 %v320, %v316
    %v357 = vpack.c.b16 %v321, %v317
    %v358 = vpack.c.b16 %v322, %v318
    %v359 = vpack.c.b16 %v323, %v319
    %v360 = vpack.c.b16 %v328, %v324
    %v361 = vpack.c.b16 %v329, %v325
    %v362 = vpack.c.b16 %v330, %v326
    %v363 = vpack.c.b16 %v331, %v327
    %396 = vmatprep.subr.bf16.mxu0 %v333
    %397 = vmatpush1.bf16.msra.mxu0 %v332
    %398 = vmatprep.subr.bf16.mxu0 %v337
    %399 = vmatpush1.bf16.msra.mxu0 %v336
    %400 = vmatprep.subr.bf16.mxu0 %v341
    %401 = vmatpush1.bf16.msra.mxu0 %v340
    %402 = vmatprep.subr.bf16.mxu0 %v345
    %403 = vmatpush1.bf16.msra.mxu0 %v344
    %404 = vmatprep.subr.bf16.mxu0 %v349
    %405 = vmatpush1.bf16.msra.mxu0 %v348
    %406 = vmatprep.subr.bf16.mxu0 %v353
    %407 = vmatpush1.bf16.msra.mxu0 %v352
    %408 = vmatprep.subr.bf16.mxu0 %v357
    %409 = vmatpush1.bf16.msra.mxu0 %v356
    %410 = vmatprep.subr.bf16.mxu0 %v361
    %411 = vmatpush1.bf16.msra.mxu0 %v360
    %412 = vmatprep.subr.bf16.mxu0 0
    %413 = vmatpush1.bf16.msra.mxu0 0
    %414 = vmatprep.subr.bf16.mxu0 0
    %415 = vmatpush1.bf16.msra.mxu0 0
    %416 = vmatprep.subr.bf16.mxu0 0
    %417 = vmatpush1.bf16.msra.mxu0 0
    %418 = vmatprep.subr.bf16.mxu0 0
    %419 = vmatpush1.bf16.msra.mxu0 0
    %420 = vmatprep.subr.bf16.mxu0 0
    %421 = vmatpush1.bf16.msra.mxu0 0
    %422 = vmatprep.subr.bf16.mxu0 0
    %423 = vmatpush1.bf16.msra.mxu0 0
    %424 = vmatprep.subr.bf16.mxu0 0
    %425 = vmatpush1.bf16.msra.mxu0 0
    %426 = vmatprep.subr.bf16.mxu0 0
    %427 = vmatpush1.bf16.msra.mxu0 0
    %428 = vmatprep.mubr.bf16.mxu0 0
    %429 = vmatmul.mubr.bf16.gmra.mrb[0].mxu0 0
    %v430 = vpop.f32.mrb[0].mxu0
    %v431 = vadd.f32 0.0, %v430
    %v432 = vpop.f32.mrb[0].mxu0
    %v433 = vadd.f32 0.0, %v432
    %v434 = vpop.f32.mrb[0].mxu0
    %v435 = vpop.f32.mrb[0].mxu0
    %436 = vdwg.mxu0
    %437 = vmatprep.subr.bf16.mxu0 %v335
    %438 = vmatpush1.bf16.msra.mxu0 %v334
    %439 = vmatprep.subr.bf16.mxu0 %v339
    %440 = vmatpush1.bf16.msra.mxu0 %v338
    %441 = vmatprep.subr.bf16.mxu0 %v343
    %442 = vmatpush1.bf16.msra.mxu0 %v342
    %443 = vmatprep.subr.bf16.mxu0 %v347
    %444 = vmatpush1.bf16.msra.mxu0 %v346
    %445 = vmatprep.subr.bf16.mxu0 %v351
    %446 = vmatpush1.bf16.msra.mxu0 %v350
    %447 = vmatprep.subr.bf16.mxu0 %v355
    %448 = vmatpush1.bf16.msra.mxu0 %v354
    %449 = vmatprep.subr.bf16.mxu0 %v359
    %450 = vmatpush1.bf16.msra.mxu0 %v358
    %451 = vmatprep.subr.bf16.mxu0 %v363
    %452 = vmatpush1.bf16.msra.mxu0 %v362
    %453 = vmatprep.subr.bf16.mxu0 0
    %454 = vmatpush1.bf16.msra.mxu0 0
    %455 = vmatprep.subr.bf16.mxu0 0
    %456 = vmatpush1.bf16.msra.mxu0 0
    %457 = vmatprep.subr.bf16.mxu0 0
    %458 = vmatpush1.bf16.msra.mxu0 0
    %459 = vmatprep.subr.bf16.mxu0 0
    %460 = vmatpush1.bf16.msra.mxu0 0
    %461 = vmatprep.subr.bf16.mxu0 0
    %462 = vmatpush1.bf16.msra.mxu0 0
    %463 = vmatprep.subr.bf16.mxu0 0
    %464 = vmatpush1.bf16.msra.mxu0 0
    %465 = vmatprep.subr.bf16.mxu0 0
    %466 = vmatpush1.bf16.msra.mxu0 0
    %467 = vmatprep.subr.bf16.mxu0 0
    %468 = vmatpush1.bf16.msra.mxu0 0
    %469 = vmatprep.mubr.bf16.mxu0 0
    %470 = vmatmul.mubr.bf16.gmra.mrb[0].mxu0 0
    %v471 = vpop.f32.mrb[0].mxu0
    %v472 = vadd.f32 0.0, %v471
    %v473 = vpop.f32.mrb[0].mxu0
    %v474 = vadd.f32 0.0, %v473
    %v475 = vpop.f32.mrb[0].mxu0
    %v476 = vpop.f32.mrb[0].mxu0
    %477 = vdwg.mxu0
    %v478 = vadd.f32 %v200, %v431
    %v479 = vadd.f32 %v201, %v433
    %v480 = vadd.f32 %v202, %v472
    %v481 = vadd.f32 %v203, %v474
    %v482 = vxor.u32 %v478, 2147483648
    %v483 = vmul.f32 %v482, 1.442695
    %v484 = vpow.pop %v483
    %v485 = vadd.f32 %v484, 1.0
    %v486 = vrcp.pop %v485
    %v487 = vmul.f32 1.0, %v486
    %v488 = vxor.u32 %v479, 2147483648
    %v489 = vmul.f32 %v488, 1.442695
    %v490 = vpow.pop %v489
    %v491 = vadd.f32 %v490, 1.0
    %v492 = vrcp.pop %v491
    %v493 = vmul.f32 1.0, %v492
    %v494 = vtanh.pop %v480
    %v495 = vxor.u32 %v481, 2147483648
    %v496 = vmul.f32 %v495, 1.442695
    %v497 = vpow.pop %v496
    %v498 = vadd.f32 %v497, 1.0
    %v499 = vrcp.pop %v498
    %v500 = vmul.f32 1.0, %v499
    %v501 = vmul.f32 %v493, 0.0
    %v502 = vmul.f32 %v487, %v494
    %v503 = vadd.f32 %v501, %v502
    %v504 = vtanh.pop %v503
    %v505 = vmul.f32 %v500, %v504
    %vm506 = vcmp.eq.s32.totalorder %v199, 0
    %v507 = vsel %vm506, 1, 0
    %508 = vset.pattern.permute.xlu0 0
    %509 = vperm.xlu0 %508, %v507
    %v510 = vpop.permute.xlu0 %509
    %vm511 = vcmp.eq.s32.totalorder %v510, 1
    %v512 = vsel %vm511, %v505, 0.0
    %v513 = vld [vmem:[#allocation2] sm:$0xc]
    %v514 = vld [vmem:[#allocation2 + $0x8] sm:$0xc]
    %v515 = vld [vmem:[#allocation2 + $0x10] sm:$0xc]
    %v516 = vld [vmem:[#allocation2 + $0x18] sm:$0xc]
    %v517 = vpack.c.bf16 %v505, %v505
    %518 = vmatprep.subr.bf16.mxu0 %v333
    %519 = vmatpush1.bf16.msra.mxu0 %v332
    %520 = vmatprep.subr.bf16.mxu0 %v337
    %521 = vmatpush1.bf16.msra.mxu0 %v336
    %522 = vmatprep.subr.bf16.mxu0 %v341
    %523 = vmatpush1.bf16.msra.mxu0 %v340
    %524 = vmatprep.subr.bf16.mxu0 %v345
    %525 = vmatpush1.bf16.msra.mxu0 %v344
    %526 = vmatprep.subr.bf16.mxu0 %v349
    %527 = vmatpush1.bf16.msra.mxu0 %v348
    %528 = vmatprep.subr.bf16.mxu0 %v353
    %529 = vmatpush1.bf16.msra.mxu0 %v352
    %530 = vmatprep.subr.bf16.mxu0 %v357
    %531 = vmatpush1.bf16.msra.mxu0 %v356
    %532 = vmatprep.subr.bf16.mxu0 %v361
    %533 = vmatpush1.bf16.msra.mxu0 %v360
    %534 = vmatprep.subr.bf16.mxu0 0
    %535 = vmatpush1.bf16.msra.mxu0 0
    %536 = vmatprep.subr.bf16.mxu0 0
    %537 = vmatpush1.bf16.msra.mxu0 0
    %538 = vmatprep.subr.bf16.mxu0 0
    %539 = vmatpush1.bf16.msra.mxu0 0
    %540 = vmatprep.subr.bf16.mxu0 0
    %541 = vmatpush1.bf16.msra.mxu0 0
    %542 = vmatprep.subr.bf16.mxu0 0
    %543 = vmatpush1.bf16.msra.mxu0 0
    %544 = vmatprep.subr.bf16.mxu0 0
    %545 = vmatpush1.bf16.msra.mxu0 0
    %546 = vmatprep.subr.bf16.mxu0 0
    %547 = vmatpush1.bf16.msra.mxu0 0
    %548 = vmatprep.subr.bf16.mxu0 0
    %549 = vmatpush1.bf16.msra.mxu0 0
    %550 = vmatprep.mubr.bf16.mxu0 0
    %551 = vmatmul.mubr.bf16.gmra.mrb[0].mxu0 %v517
    %v552 = vpop.f32.mrb[0].mxu0
    %v553 = vadd.f32 0.0, %v552
    %v554 = vpop.f32.mrb[0].mxu0
    %v555 = vadd.f32 0.0, %v554
    %v556 = vpop.f32.mrb[0].mxu0
    %v557 = vpop.f32.mrb[0].mxu0
    %558 = vdwg.mxu0
    %559 = vmatprep.subr.bf16.mxu0 %v335
    %560 = vmatpush1.bf16.msra.mxu0 %v334
    %561 = vmatprep.subr.bf16.mxu0 %v339
    %562 = vmatpush1.bf16.msra.mxu0 %v338
    %563 = vmatprep.subr.bf16.mxu0 %v343
    %564 = vmatpush1.bf16.msra.mxu0 %v342
    %565 = vmatprep.subr.bf16.mxu0 %v347
    %566 = vmatpush1.bf16.msra.mxu0 %v346
    %567 = vmatprep.subr.bf16.mxu0 %v351
    %568 = vmatpush1.bf16.msra.mxu0 %v350
    %569 = vmatprep.subr.bf16.mxu0 %v355
    %570 = vmatpush1.bf16.msra.mxu0 %v354
    %571 = vmatprep.subr.bf16.mxu0 %v359
    %572 = vmatpush1.bf16.msra.mxu0 %v358
    %573 = vmatprep.subr.bf16.mxu0 %v363
    %574 = vmatpush1.bf16.msra.mxu0 %v362
    %575 = vmatprep.subr.bf16.mxu0 0
    %576 = vmatpush1.bf16.msra.mxu0 0
    %577 = vmatprep.subr.bf16.mxu0 0
    %578 = vmatpush1.bf16.msra.mxu0 0
    %579 = vmatprep.subr.bf16.mxu0 0
    %580 = vmatpush1.bf16.msra.mxu0 0
    %581 = vmatprep.subr.bf16.mxu0 0
    %582 = vmatpush1.bf16.msra.mxu0 0
    %583 = vmatprep.subr.bf16.mxu0 0
    %584 = vmatpush1.bf16.msra.mxu0 0
    %585 = vmatprep.subr.bf16.mxu0 0
    %586 = vmatpush1.bf16.msra.mxu0 0
    %587 = vmatprep.subr.bf16.mxu0 0
    %588 = vmatpush1.bf16.msra.mxu0 0
    %589 = vmatprep.subr.bf16.mxu0 0
    %590 = vmatpush1.bf16.msra.mxu0 0
    %591 = vmatprep.mubr.bf16.mxu0 0
    %592 = vmatmul.mubr.bf16.gmra.mrb[0].mxu0 %v517
    %v593 = vpop.f32.mrb[0].mxu0
    %v594 = vadd.f32 0.0, %v593
    %v595 = vpop.f32.mrb[0].mxu0
    %v596 = vadd.f32 0.0, %v595
    %v597 = vpop.f32.mrb[0].mxu0
    %v598 = vpop.f32.mrb[0].mxu0
    %599 = vdwg.mxu0
    %v604 = vrot.slane %v553, 6
    %v605 = vrot.slane %v555, 6
    %v606 = vrot.slane %v594, 6
    %v607 = vrot.slane %v596, 6
    %v612 = vadd.f32 %v513, %v604
    %v613 = vadd.f32 %v514, %v605
    %v614 = vadd.f32 %v515, %v606
    %v615 = vadd.f32 %v516, %v607
    %v616 = vxor.u32 %v612, 2147483648
    %v617 = vmul.f32 %v616, 1.442695
    %v618 = vpow.pop %v617
    %v619 = vadd.f32 %v618, 1.0
    %v620 = vrcp.pop %v619
    %v621 = vmul.f32 1.0, %v620
    %v622 = vxor.u32 %v613, 2147483648
    %v623 = vmul.f32 %v622, 1.442695
    %v624 = vpow.pop %v623
    %v625 = vadd.f32 %v624, 1.0
    %v626 = vrcp.pop %v625
    %v627 = vmul.f32 1.0, %v626
    %v628 = vtanh.pop %v614
    %v629 = vxor.u32 %v615, 2147483648
    %v630 = vmul.f32 %v629, 1.442695
    %v631 = vpow.pop %v630
    %v632 = vadd.f32 %v631, 1.0
    %v633 = vrcp.pop %v632
    %v634 = vmul.f32 1.0, %v633
    %v636 = vrot.slane %v503, 6
    %v638 = vmul.f32 %v627, %v636
    %v639 = vmul.f32 %v621, %v628
    %v640 = vadd.f32 %v638, %v639
    %v641 = vtanh.pop %v640
    %v642 = vmul.f32 %v634, %v641
    %vm643 = vcmp.eq.s32.totalorder %v199, 1
    %v644 = vsel %vm643, 1, 0
    %645 = vset.pattern.permute.xlu0 0
    %646 = vperm.xlu0 %645, %v644
    %v647 = vpop.permute.xlu0 %646
    %vm648 = vcmp.eq.s32.totalorder %v647, 1
    %v650 = vrot.slane %v642, 2
    %v652 = vsel %vm648, %v650, %v512
    %v653 = vld [vmem:[#allocation2] sm:$0x30]
    %v654 = vld [vmem:[#allocation2 + $0x8] sm:$0x30]
    %v655 = vld [vmem:[#allocation2 + $0x10] sm:$0x30]
    %v656 = vld [vmem:[#allocation2 + $0x18] sm:$0x30]
    %v657 = vpack.c.bf16 %v642, %v642
    %v659 = vrot.slane %v657, 1
    %661 = vmatprep.subr.bf16.mxu0 %v333
    %662 = vmatpush1.bf16.msra.mxu0 %v332
    %663 = vmatprep.subr.bf16.mxu0 %v337
    %664 = vmatpush1.bf16.msra.mxu0 %v336
    %665 = vmatprep.subr.bf16.mxu0 %v341
    %666 = vmatpush1.bf16.msra.mxu0 %v340
    %667 = vmatprep.subr.bf16.mxu0 %v345
    %668 = vmatpush1.bf16.msra.mxu0 %v344
    %669 = vmatprep.subr.bf16.mxu0 %v349
    %670 = vmatpush1.bf16.msra.mxu0 %v348
    %671 = vmatprep.subr.bf16.mxu0 %v353
    %672 = vmatpush1.bf16.msra.mxu0 %v352
    %673 = vmatprep.subr.bf16.mxu0 %v357
    %674 = vmatpush1.bf16.msra.mxu0 %v356
    %675 = vmatprep.subr.bf16.mxu0 %v361
    %676 = vmatpush1.bf16.msra.mxu0 %v360
    %677 = vmatprep.subr.bf16.mxu0 0
    %678 = vmatpush1.bf16.msra.mxu0 0
    %679 = vmatprep.subr.bf16.mxu0 0
    %680 = vmatpush1.bf16.msra.mxu0 0
    %681 = vmatprep.subr.bf16.mxu0 0
    %682 = vmatpush1.bf16.msra.mxu0 0
    %683 = vmatprep.subr.bf16.mxu0 0
    %684 = vmatpush1.bf16.msra.mxu0 0
    %685 = vmatprep.subr.bf16.mxu0 0
    %686 = vmatpush1.bf16.msra.mxu0 0
    %687 = vmatprep.subr.bf16.mxu0 0
    %688 = vmatpush1.bf16.msra.mxu0 0
    %689 = vmatprep.subr.bf16.mxu0 0
    %690 = vmatpush1.bf16.msra.mxu0 0
    %691 = vmatprep.subr.bf16.mxu0 0
    %692 = vmatpush1.bf16.msra.mxu0 0
    %693 = vmatprep.mubr.bf16.mxu0 0
    %694 = vmatmul.mubr.bf16.gmra.mrb[0].mxu0 %v659
    %v695 = vpop.f32.mrb[0].mxu0
    %v696 = vadd.f32 0.0, %v695
    %v697 = vpop.f32.mrb[0].mxu0
    %v698 = vadd.f32 0.0, %v697
    %v699 = vpop.f32.mrb[0].mxu0
    %v700 = vpop.f32.mrb[0].mxu0
    %701 = vdwg.mxu0
    %702 = vmatprep.subr.bf16.mxu0 %v335
    %703 = vmatpush1.bf16.msra.mxu0 %v334
    %704 = vmatprep.subr.bf16.mxu0 %v339
    %705 = vmatpush1.bf16.msra.mxu0 %v338
    %706 = vmatprep.subr.bf16.mxu0 %v343
    %707 = vmatpush1.bf16.msra.mxu0 %v342
    %708 = vmatprep.subr.bf16.mxu0 %v347
    %709 = vmatpush1.bf16.msra.mxu0 %v346
    %710 = vmatprep.subr.bf16.mxu0 %v351
    %711 = vmatpush1.bf16.msra.mxu0 %v350
    %712 = vmatprep.subr.bf16.mxu0 %v355
    %713 = vmatpush1.bf16.msra.mxu0 %v354
    %714 = vmatprep.subr.bf16.mxu0 %v359
    %715 = vmatpush1.bf16.msra.mxu0 %v358
    %716 = vmatprep.subr.bf16.mxu0 %v363
    %717 = vmatpush1.bf16.msra.mxu0 %v362
    %718 = vmatprep.subr.bf16.mxu0 0
    %719 = vmatpush1.bf16.msra.mxu0 0
    %720 = vmatprep.subr.bf16.mxu0 0
    %721 = vmatpush1.bf16.msra.mxu0 0
    %722 = vmatprep.subr.bf16.mxu0 0
    %723 = vmatpush1.bf16.msra.mxu0 0
    %724 = vmatprep.subr.bf16.mxu0 0
    %725 = vmatpush1.bf16.msra.mxu0 0
    %726 = vmatprep.subr.bf16.mxu0 0
    %727 = vmatpush1.bf16.msra.mxu0 0
    %728 = vmatprep.subr.bf16.mxu0 0
    %729 = vmatpush1.bf16.msra.mxu0 0
    %730 = vmatprep.subr.bf16.mxu0 0
    %731 = vmatpush1.bf16.msra.mxu0 0
    %732 = vmatprep.subr.bf16.mxu0 0
    %733 = vmatpush1.bf16.msra.mxu0 0
    %734 = vmatprep.mubr.bf16.mxu0 0
    %735 = vmatmul.mubr.bf16.gmra.mrb[0].mxu0 %v659
    %v736 = vpop.f32.mrb[0].mxu0
    %v737 = vadd.f32 0.0, %v736
    %v738 = vpop.f32.mrb[0].mxu0
    %v739 = vadd.f32 0.0, %v738
    %v740 = vpop.f32.mrb[0].mxu0
    %v741 = vpop.f32.mrb[0].mxu0
    %742 = vdwg.mxu0
    %v747 = vrot.slane %v696, 4
    %v748 = vrot.slane %v698, 4
    %v749 = vrot.slane %v737, 4
    %v750 = vrot.slane %v739, 4
    %v755 = vadd.f32 %v653, %v747
    %v756 = vadd.f32 %v654, %v748
    %v757 = vadd.f32 %v655, %v749
    %v758 = vadd.f32 %v656, %v750
    %v759 = vxor.u32 %v755, 2147483648
    %v760 = vmul.f32 %v759, 1.442695
    %v761 = vpow.pop %v760
    %v762 = vadd.f32 %v761, 1.0
    %v763 = vrcp.pop %v762
    %v764 = vmul.f32 1.0, %v763
    %v765 = vxor.u32 %v756, 2147483648
    %v766 = vmul.f32 %v765, 1.442695
    %v767 = vpow.pop %v766
    %v768 = vadd.f32 %v767, 1.0
    %v769 = vrcp.pop %v768
    %v770 = vmul.f32 1.0, %v769
    %v771 = vtanh.pop %v757
    %v772 = vxor.u32 %v758, 2147483648
    %v773 = vmul.f32 %v772, 1.442695
    %v774 = vpow.pop %v773
    %v775 = vadd.f32 %v774, 1.0
    %v776 = vrcp.pop %v775
    %v777 = vmul.f32 1.0, %v776
    %v779 = vrot.slane %v640, 6
    %v781 = vmul.f32 %v770, %v779
    %v782 = vmul.f32 %v764, %v771
    %v783 = vadd.f32 %v781, %v782
    %v784 = vtanh.pop %v783
    %v785 = vmul.f32 %v777, %v784
    %vm786 = vcmp.eq.s32.totalorder %v199, 2
    %v787 = vsel %vm786, 1, 0
    %788 = vset.pattern.permute.xlu0 0
    %789 = vperm.xlu0 %788, %v787
    %v790 = vpop.permute.xlu0 %789
    %vm791 = vcmp.eq.s32.totalorder %v790, 1
    %v793 = vrot.slane %v785, 4
    %v795 = vsel %vm791, %v793, %v652
    %v796 = vld [vmem:[#allocation2] sm:$0xc0]
    %v797 = vld [vmem:[#allocation2 + $0x8] sm:$0xc0]
    %v798 = vld [vmem:[#allocation2 + $0x10] sm:$0xc0]
    %v799 = vld [vmem:[#allocation2 + $0x18] sm:$0xc0]
    %v800 = vpack.c.bf16 %v785, %v785
    %v802 = vrot.slane %v800, 2
    %804 = vmatprep.subr.bf16.mxu0 %v333
    %805 = vmatpush1.bf16.msra.mxu0 %v332
    %806 = vmatprep.subr.bf16.mxu0 %v337
    %807 = vmatpush1.bf16.msra.mxu0 %v336
    %808 = vmatprep.subr.bf16.mxu0 %v341
    %809 = vmatpush1.bf16.msra.mxu0 %v340
    %810 = vmatprep.subr.bf16.mxu0 %v345
    %811 = vmatpush1.bf16.msra.mxu0 %v344
    %812 = vmatprep.subr.bf16.mxu0 %v349
    %813 = vmatpush1.bf16.msra.mxu0 %v348
    %814 = vmatprep.subr.bf16.mxu0 %v353
    %815 = vmatpush1.bf16.msra.mxu0 %v352
    %816 = vmatprep.subr.bf16.mxu0 %v357
    %817 = vmatpush1.bf16.msra.mxu0 %v356
    %818 = vmatprep.subr.bf16.mxu0 %v361
    %819 = vmatpush1.bf16.msra.mxu0 %v360
    %820 = vmatprep.subr.bf16.mxu0 0
    %821 = vmatpush1.bf16.msra.mxu0 0
    %822 = vmatprep.subr.bf16.mxu0 0
    %823 = vmatpush1.bf16.msra.mxu0 0
    %824 = vmatprep.subr.bf16.mxu0 0
    %825 = vmatpush1.bf16.msra.mxu0 0
    %826 = vmatprep.subr.bf16.mxu0 0
    %827 = vmatpush1.bf16.msra.mxu0 0
    %828 = vmatprep.subr.bf16.mxu0 0
    %829 = vmatpush1.bf16.msra.mxu0 0
    %830 = vmatprep.subr.bf16.mxu0 0
    %831 = vmatpush1.bf16.msra.mxu0 0
    %832 = vmatprep.subr.bf16.mxu0 0
    %833 = vmatpush1.bf16.msra.mxu0 0
    %834 = vmatprep.subr.bf16.mxu0 0
    %835 = vmatpush1.bf16.msra.mxu0 0
    %836 = vmatprep.mubr.bf16.mxu0 0
    %837 = vmatmul.mubr.bf16.gmra.mrb[0].mxu0 %v802
    %v838 = vpop.f32.mrb[0].mxu0
    %v839 = vadd.f32 0.0, %v838
    %v840 = vpop.f32.mrb[0].mxu0
    %v841 = vadd.f32 0.0, %v840
    %v842 = vpop.f32.mrb[0].mxu0
    %v843 = vpop.f32.mrb[0].mxu0
    %844 = vdwg.mxu0
    %845 = vmatprep.subr.bf16.mxu0 %v335
    %846 = vmatpush1.bf16.msra.mxu0 %v334
    %847 = vmatprep.subr.bf16.mxu0 %v339
    %848 = vmatpush1.bf16.msra.mxu0 %v338
    %849 = vmatprep.subr.bf16.mxu0 %v343
    %850 = vmatpush1.bf16.msra.mxu0 %v342
    %851 = vmatprep.subr.bf16.mxu0 %v347
    %852 = vmatpush1.bf16.msra.mxu0 %v346
    %853 = vmatprep.subr.bf16.mxu0 %v351
    %854 = vmatpush1.bf16.msra.mxu0 %v350
    %855 = vmatprep.subr.bf16.mxu0 %v355
    %856 = vmatpush1.bf16.msra.mxu0 %v354
    %857 = vmatprep.subr.bf16.mxu0 %v359
    %858 = vmatpush1.bf16.msra.mxu0 %v358
    %859 = vmatprep.subr.bf16.mxu0 %v363
    %860 = vmatpush1.bf16.msra.mxu0 %v362
    %861 = vmatprep.subr.bf16.mxu0 0
    %862 = vmatpush1.bf16.msra.mxu0 0
    %863 = vmatprep.subr.bf16.mxu0 0
    %864 = vmatpush1.bf16.msra.mxu0 0
    %865 = vmatprep.subr.bf16.mxu0 0
    %866 = vmatpush1.bf16.msra.mxu0 0
    %867 = vmatprep.subr.bf16.mxu0 0
    %868 = vmatpush1.bf16.msra.mxu0 0
    %869 = vmatprep.subr.bf16.mxu0 0
    %870 = vmatpush1.bf16.msra.mxu0 0
    %871 = vmatprep.subr.bf16.mxu0 0
    %872 = vmatpush1.bf16.msra.mxu0 0
    %873 = vmatprep.subr.bf16.mxu0 0
    %874 = vmatpush1.bf16.msra.mxu0 0
    %875 = vmatprep.subr.bf16.mxu0 0
    %876 = vmatpush1.bf16.msra.mxu0 0
    %877 = vmatprep.mubr.bf16.mxu0 0
    %878 = vmatmul.mubr.bf16.gmra.mrb[0].mxu0 %v802
    %v879 = vpop.f32.mrb[0].mxu0
    %v880 = vadd.f32 0.0, %v879
    %v881 = vpop.f32.mrb[0].mxu0
    %v882 = vadd.f32 0.0, %v881
    %v883 = vpop.f32.mrb[0].mxu0
    %v884 = vpop.f32.mrb[0].mxu0
    %885 = vdwg.mxu0
    %v890 = vrot.slane %v839, 2
    %v891 = vrot.slane %v841, 2
    %v892 = vrot.slane %v880, 2
    %v893 = vrot.slane %v882, 2
    %v898 = vadd.f32 %v796, %v890
    %v899 = vadd.f32 %v797, %v891
    %v900 = vadd.f32 %v798, %v892
    %v901 = vadd.f32 %v799, %v893
    %v902 = vxor.u32 %v898, 2147483648
    %v903 = vmul.f32 %v902, 1.442695
    %v904 = vpow.pop %v903
    %v905 = vadd.f32 %v904, 1.0
    %v906 = vrcp.pop %v905
    %v907 = vmul.f32 1.0, %v906
    %v908 = vxor.u32 %v899, 2147483648
    %v909 = vmul.f32 %v908, 1.442695
    %v910 = vpow.pop %v909
    %v911 = vadd.f32 %v910, 1.0
    %v912 = vrcp.pop %v911
    %v913 = vmul.f32 1.0, %v912
    %v914 = vtanh.pop %v900
    %v915 = vxor.u32 %v901, 2147483648
    %v916 = vmul.f32 %v915, 1.442695
    %v917 = vpow.pop %v916
    %v918 = vadd.f32 %v917, 1.0
    %v919 = vrcp.pop %v918
    %v920 = vmul.f32 1.0, %v919
    %v922 = vrot.slane %v783, 6
    %v924 = vmul.f32 %v913, %v922
    %v925 = vmul.f32 %v907, %v914
    %v926 = vadd.f32 %v924, %v925
    %v927 = vtanh.pop %v926
    %v928 = vmul.f32 %v920, %v927
    %vm929 = vcmp.eq.s32.totalorder %v199, 3
    %v930 = vsel %vm929, 1, 0
    %931 = vset.pattern.permute.xlu0 0
    %932 = vperm.xlu0 %931, %v930
    %v933 = vpop.permute.xlu0 %932
    %vm934 = vcmp.eq.s32.totalorder %v933, 1
    %v936 = vrot.slane %v928, 6
    %v938 = vsel %vm934, %v936, %v795
    %v939 = vld [vmem:[#allocation2 + $0x20] sm:$0x3]
    %v940 = vld [vmem:[#allocation2 + $0x28] sm:$0x3]
    %v941 = vld [vmem:[#allocation2 + $0x30] sm:$0x3]
    %v942 = vld [vmem:[#allocation2 + $0x38] sm:$0x3]
    %v943 = vpack.c.bf16 %v928, %v928
    %v945 = vrot.slane %v943, 3
    %947 = vmatprep.subr.bf16.mxu0 %v333
    %948 = vmatpush1.bf16.msra.mxu0 %v332
    %949 = vmatprep.subr.bf16.mxu0 %v337
    %950 = vmatpush1.bf16.msra.mxu0 %v336
    %951 = vmatprep.subr.bf16.mxu0 %v341
    %952 = vmatpush1.bf16.msra.mxu0 %v340
    %953 = vmatprep.subr.bf16.mxu0 %v345
    %954 = vmatpush1.bf16.msra.mxu0 %v344
    %955 = vmatprep.subr.bf16.mxu0 %v349
    %956 = vmatpush1.bf16.msra.mxu0 %v348
    %957 = vmatprep.subr.bf16.mxu0 %v353
    %958 = vmatpush1.bf16.msra.mxu0 %v352
    %959 = vmatprep.subr.bf16.mxu0 %v357
    %960 = vmatpush1.bf16.msra.mxu0 %v356
    %961 = vmatprep.subr.bf16.mxu0 %v361
    %962 = vmatpush1.bf16.msra.mxu0 %v360
    %963 = vmatprep.subr.bf16.mxu0 0
    %964 = vmatpush1.bf16.msra.mxu0 0
    %965 = vmatprep.subr.bf16.mxu0 0
    %966 = vmatpush1.bf16.msra.mxu0 0
    %967 = vmatprep.subr.bf16.mxu0 0
    %968 = vmatpush1.bf16.msra.mxu0 0
    %969 = vmatprep.subr.bf16.mxu0 0
    %970 = vmatpush1.bf16.msra.mxu0 0
    %971 = vmatprep.subr.bf16.mxu0 0
    %972 = vmatpush1.bf16.msra.mxu0 0
    %973 = vmatprep.subr.bf16.mxu0 0
    %974 = vmatpush1.bf16.msra.mxu0 0
    %975 = vmatprep.subr.bf16.mxu0 0
    %976 = vmatpush1.bf16.msra.mxu0 0
    %977 = vmatprep.subr.bf16.mxu0 0
    %978 = vmatpush1.bf16.msra.mxu0 0
    %979 = vmatprep.mubr.bf16.mxu0 0
    %980 = vmatmul.mubr.bf16.gmra.mrb[0].mxu0 %v945
    %v981 = vpop.f32.mrb[0].mxu0
    %v982 = vadd.f32 0.0, %v981
    %v983 = vpop.f32.mrb[0].mxu0
    %v984 = vadd.f32 0.0, %v983
    %v985 = vpop.f32.mrb[0].mxu0
    %v986 = vpop.f32.mrb[0].mxu0
    %987 = vdwg.mxu0
    %988 = vmatprep.subr.bf16.mxu0 %v335
    %989 = vmatpush1.bf16.msra.mxu0 %v334
    %990 = vmatprep.subr.bf16.mxu0 %v339
    %991 = vmatpush1.bf16.msra.mxu0 %v338
    %992 = vmatprep.subr.bf16.mxu0 %v343
    %993 = vmatpush1.bf16.msra.mxu0 %v342
    %994 = vmatprep.subr.bf16.mxu0 %v347
    %995 = vmatpush1.bf16.msra.mxu0 %v346
    %996 = vmatprep.subr.bf16.mxu0 %v351
    %997 = vmatpush1.bf16.msra.mxu0 %v350
    %998 = vmatprep.subr.bf16.mxu0 %v355
    %999 = vmatpush1.bf16.msra.mxu0 %v354
    %1000 = vmatprep.subr.bf16.mxu0 %v359
    %1001 = vmatpush1.bf16.msra.mxu0 %v358
    %1002 = vmatprep.subr.bf16.mxu0 %v363
    %1003 = vmatpush1.bf16.msra.mxu0 %v362
    %1004 = vmatprep.subr.bf16.mxu0 0
    %1005 = vmatpush1.bf16.msra.mxu0 0
    %1006 = vmatprep.subr.bf16.mxu0 0
    %1007 = vmatpush1.bf16.msra.mxu0 0
    %1008 = vmatprep.subr.bf16.mxu0 0
    %1009 = vmatpush1.bf16.msra.mxu0 0
    %1010 = vmatprep.subr.bf16.mxu0 0
    %1011 = vmatpush1.bf16.msra.mxu0 0
    %1012 = vmatprep.subr.bf16.mxu0 0
    %1013 = vmatpush1.bf16.msra.mxu0 0
    %1014 = vmatprep.subr.bf16.mxu0 0
    %1015 = vmatpush1.bf16.msra.mxu0 0
    %1016 = vmatprep.subr.bf16.mxu0 0
    %1017 = vmatpush1.bf16.msra.mxu0 0
    %1018 = vmatprep.subr.bf16.mxu0 0
    %1019 = vmatpush1.bf16.msra.mxu0 0
    %1020 = vmatprep.mubr.bf16.mxu0 0
    %1021 = vmatmul.mubr.bf16.gmra.mrb[0].mxu0 %v945
    %v1022 = vpop.f32.mrb[0].mxu0
    %v1023 = vadd.f32 0.0, %v1022
    %v1024 = vpop.f32.mrb[0].mxu0
    %v1025 = vadd.f32 0.0, %v1024
    %v1026 = vpop.f32.mrb[0].mxu0
    %v1027 = vpop.f32.mrb[0].mxu0
    %1028 = vdwg.mxu0
    %v1029 = vadd.f32 %v939, %v982
    %v1030 = vadd.f32 %v940, %v984
    %v1031 = vadd.f32 %v941, %v1023
    %v1032 = vadd.f32 %v942, %v1025
    %v1033 = vxor.u32 %v1029, 2147483648
    %v1034 = vmul.f32 %v1033, 1.442695
    %v1035 = vpow.pop %v1034
    %v1036 = vadd.f32 %v1035, 1.0
    %v1037 = vrcp.pop %v1036
    %v1038 = vmul.f32 1.0, %v1037
    %v1039 = vxor.u32 %v1030, 2147483648
    %v1040 = vmul.f32 %v1039, 1.442695
    %v1041 = vpow.pop %v1040
    %v1042 = vadd.f32 %v1041, 1.0
    %v1043 = vrcp.pop %v1042
    %v1044 = vmul.f32 1.0, %v1043
    %v1045 = vtanh.pop %v1031
    %v1046 = vxor.u32 %v1032, 2147483648
    %v1047 = vmul.f32 %v1046, 1.442695
    %v1048 = vpow.pop %v1047
    %v1049 = vadd.f32 %v1048, 1.0
    %v1050 = vrcp.pop %v1049
    %v1051 = vmul.f32 1.0, %v1050
    %v1053 = vrot.slane %v926, 6
    %v1055 = vmul.f32 %v1044, %v1053
    %v1056 = vmul.f32 %v1038, %v1045
    %v1057 = vadd.f32 %v1055, %v1056
    %v1058 = vtanh.pop %v1057
    %v1059 = vmul.f32 %v1051, %v1058
    %vm1060 = vcmp.eq.s32.totalorder %v199, 4
    %v1061 = vsel %vm1060, 1, 0
    %1062 = vset.pattern.permute.xlu0 0
    %1063 = vperm.xlu0 %1062, %v1061
    %v1064 = vpop.permute.xlu0 %1063
    %vm1065 = vcmp.eq.s32.totalorder %v1064, 1
    %v1066 = vsel %vm1065, %v1059, %v938
    %v1067 = vld [vmem:[#allocation2 + $0x20] sm:$0xc]
    %v1068 = vld [vmem:[#allocation2 + $0x28] sm:$0xc]
    %v1069 = vld [vmem:[#allocation2 + $0x30] sm:$0xc]
    %v1070 = vld [vmem:[#allocation2 + $0x38] sm:$0xc]
    %v1071 = vpack.c.bf16 %v1059, %v1059
    %1072 = vmatprep.subr.bf16.mxu0 %v333
    %1073 = vmatpush1.bf16.msra.mxu0 %v332
    %1074 = vmatprep.subr.bf16.mxu0 %v337
    %1075 = vmatpush1.bf16.msra.mxu0 %v336
    %1076 = vmatprep.subr.bf16.mxu0 %v341
    %1077 = vmatpush1.bf16.msra.mxu0 %v340
    %1078 = vmatprep.subr.bf16.mxu0 %v345
    %1079 = vmatpush1.bf16.msra.mxu0 %v344
    %1080 = vmatprep.subr.bf16.mxu0 %v349
    %1081 = vmatpush1.bf16.msra.mxu0 %v348
    %1082 = vmatprep.subr.bf16.mxu0 %v353
    %1083 = vmatpush1.bf16.msra.mxu0 %v352
    %1084 = vmatprep.subr.bf16.mxu0 %v357
    %1085 = vmatpush1.bf16.msra.mxu0 %v356
    %1086 = vmatprep.subr.bf16.mxu0 %v361
    %1087 = vmatpush1.bf16.msra.mxu0 %v360
    %1088 = vmatprep.subr.bf16.mxu0 0
    %1089 = vmatpush1.bf16.msra.mxu0 0
    %1090 = vmatprep.subr.bf16.mxu0 0
    %1091 = vmatpush1.bf16.msra.mxu0 0
    %1092 = vmatprep.subr.bf16.mxu0 0
    %1093 = vmatpush1.bf16.msra.mxu0 0
    %1094 = vmatprep.subr.bf16.mxu0 0
    %1095 = vmatpush1.bf16.msra.mxu0 0
    %1096 = vmatprep.subr.bf16.mxu0 0
    %1097 = vmatpush1.bf16.msra.mxu0 0
    %1098 = vmatprep.subr.bf16.mxu0 0
    %1099 = vmatpush1.bf16.msra.mxu0 0
    %1100 = vmatprep.subr.bf16.mxu0 0
    %1101 = vmatpush1.bf16.msra.mxu0 0
    %1102 = vmatprep.subr.bf16.mxu0 0
    %1103 = vmatpush1.bf16.msra.mxu0 0
    %1104 = vmatprep.mubr.bf16.mxu0 0
    %1105 = vmatmul.mubr.bf16.gmra.mrb[0].mxu0 %v1071
    %v1106 = vpop.f32.mrb[0].mxu0
    %v1107 = vadd.f32 0.0, %v1106
    %v1108 = vpop.f32.mrb[0].mxu0
    %v1109 = vadd.f32 0.0, %v1108
    %v1110 = vpop.f32.mrb[0].mxu0
    %v1111 = vpop.f32.mrb[0].mxu0
    %1112 = vdwg.mxu0
    %1113 = vmatprep.subr.bf16.mxu0 %v335
    %1114 = vmatpush1.bf16.msra.mxu0 %v334
    %1115 = vmatprep.subr.bf16.mxu0 %v339
    %1116 = vmatpush1.bf16.msra.mxu0 %v338
    %1117 = vmatprep.subr.bf16.mxu0 %v343
    %1118 = vmatpush1.bf16.msra.mxu0 %v342
    %1119 = vmatprep.subr.bf16.mxu0 %v347
    %1120 = vmatpush1.bf16.msra.mxu0 %v346
    %1121 = vmatprep.subr.bf16.mxu0 %v351
    %1122 = vmatpush1.bf16.msra.mxu0 %v350
    %1123 = vmatprep.subr.bf16.mxu0 %v355
    %1124 = vmatpush1.bf16.msra.mxu0 %v354
    %1125 = vmatprep.subr.bf16.mxu0 %v359
    %1126 = vmatpush1.bf16.msra.mxu0 %v358
    %1127 = vmatprep.subr.bf16.mxu0 %v363
    %1128 = vmatpush1.bf16.msra.mxu0 %v362
    %1129 = vmatprep.subr.bf16.mxu0 0
    %1130 = vmatpush1.bf16.msra.mxu0 0
    %1131 = vmatprep.subr.bf16.mxu0 0
    %1132 = vmatpush1.bf16.msra.mxu0 0
    %1133 = vmatprep.subr.bf16.mxu0 0
    %1134 = vmatpush1.bf16.msra.mxu0 0
    %1135 = vmatprep.subr.bf16.mxu0 0
    %1136 = vmatpush1.bf16.msra.mxu0 0
    %1137 = vmatprep.subr.bf16.mxu0 0
    %1138 = vmatpush1.bf16.msra.mxu0 0
    %1139 = vmatprep.subr.bf16.mxu0 0
    %1140 = vmatpush1.bf16.msra.mxu0 0
    %1141 = vmatprep.subr.bf16.mxu0 0
    %1142 = vmatpush1.bf16.msra.mxu0 0
    %1143 = vmatprep.subr.bf16.mxu0 0
    %1144 = vmatpush1.bf16.msra.mxu0 0
    %1145 = vmatprep.mubr.bf16.mxu0 0
    %1146 = vmatmul.mubr.bf16.gmra.mrb[0].mxu0 %v1071
    %v1147 = vpop.f32.mrb[0].mxu0
    %v1148 = vadd.f32 0.0, %v1147
    %v1149 = vpop.f32.mrb[0].mxu0
    %v1150 = vadd.f32 0.0, %v1149
    %v1151 = vpop.f32.mrb[0].mxu0
    %v1152 = vpop.f32.mrb[0].mxu0
    %1153 = vdwg.mxu0
    %v1158 = vrot.slane %v1107, 6
    %v1159 = vrot.slane %v1109, 6
    %v1160 = vrot.slane %v1148, 6
    %v1161 = vrot.slane %v1150, 6
    %v1166 = vadd.f32 %v1067, %v1158
    %v1167 = vadd.f32 %v1068, %v1159
    %v1168 = vadd.f32 %v1069, %v1160
    %v1169 = vadd.f32 %v1070, %v1161
    %v1170 = vxor.u32 %v1166, 2147483648
    %v1171 = vmul.f32 %v1170, 1.442695
    %v1172 = vpow.pop %v1171
    %v1173 = vadd.f32 %v1172, 1.0
    %v1174 = vrcp.pop %v1173
    %v1175 = vmul.f32 1.0, %v1174
    %v1176 = vxor.u32 %v1167, 2147483648
    %v1177 = vmul.f32 %v1176, 1.442695
    %v1178 = vpow.pop %v1177
    %v1179 = vadd.f32 %v1178, 1.0
    %v1180 = vrcp.pop %v1179
    %v1181 = vmul.f32 1.0, %v1180
    %v1182 = vtanh.pop %v1168
    %v1183 = vxor.u32 %v1169, 2147483648
    %v1184 = vmul.f32 %v1183, 1.442695
    %v1185 = vpow.pop %v1184
    %v1186 = vadd.f32 %v1185, 1.0
    %v1187 = vrcp.pop %v1186
    %v1188 = vmul.f32 1.0, %v1187
    %v1190 = vrot.slane %v1057, 6
    %v1192 = vmul.f32 %v1181, %v1190
    %v1193 = vmul.f32 %v1175, %v1182
    %v1194 = vadd.f32 %v1192, %v1193
    %v1195 = vtanh.pop %v1194
    %v1196 = vmul.f32 %v1188, %v1195
    %vm1197 = vcmp.eq.s32.totalorder %v199, 5
    %v1198 = vsel %vm1197, 1, 0
    %1199 = vset.pattern.permute.xlu0 0
    %1200 = vperm.xlu0 %1199, %v1198
    %v1201 = vpop.permute.xlu0 %1200
    %vm1202 = vcmp.eq.s32.totalorder %v1201, 1
    %v1204 = vrot.slane %v1196, 2
    %v1206 = vsel %vm1202, %v1204, %v1066
    %v1207 = vld [vmem:[#allocation2 + $0x20] sm:$0x30]
    %v1208 = vld [vmem:[#allocation2 + $0x28] sm:$0x30]
    %v1209 = vld [vmem:[#allocation2 + $0x30] sm:$0x30]
    %v1210 = vld [vmem:[#allocation2 + $0x38] sm:$0x30]
    %v1211 = vpack.c.bf16 %v1196, %v1196
    %v1213 = vrot.slane %v1211, 1
    %1215 = vmatprep.subr.bf16.mxu0 %v333
    %1216 = vmatpush1.bf16.msra.mxu0 %v332
    %1217 = vmatprep.subr.bf16.mxu0 %v337
    %1218 = vmatpush1.bf16.msra.mxu0 %v336
    %1219 = vmatprep.subr.bf16.mxu0 %v341
    %1220 = vmatpush1.bf16.msra.mxu0 %v340
    %1221 = vmatprep.subr.bf16.mxu0 %v345
    %1222 = vmatpush1.bf16.msra.mxu0 %v344
    %1223 = vmatprep.subr.bf16.mxu0 %v349
    %1224 = vmatpush1.bf16.msra.mxu0 %v348
    %1225 = vmatprep.subr.bf16.mxu0 %v353
    %1226 = vmatpush1.bf16.msra.mxu0 %v352
    %1227 = vmatprep.subr.bf16.mxu0 %v357
    %1228 = vmatpush1.bf16.msra.mxu0 %v356
    %1229 = vmatprep.subr.bf16.mxu0 %v361
    %1230 = vmatpush1.bf16.msra.mxu0 %v360
    %1231 = vmatprep.subr.bf16.mxu0 0
    %1232 = vmatpush1.bf16.msra.mxu0 0
    %1233 = vmatprep.subr.bf16.mxu0 0
    %1234 = vmatpush1.bf16.msra.mxu0 0
    %1235 = vmatprep.subr.bf16.mxu0 0
    %1236 = vmatpush1.bf16.msra.mxu0 0
    %1237 = vmatprep.subr.bf16.mxu0 0
    %1238 = vmatpush1.bf16.msra.mxu0 0
    %1239 = vmatprep.subr.bf16.mxu0 0
    %1240 = vmatpush1.bf16.msra.mxu0 0
    %1241 = vmatprep.subr.bf16.mxu0 0
    %1242 = vmatpush1.bf16.msra.mxu0 0
    %1243 = vmatprep.subr.bf16.mxu0 0
    %1244 = vmatpush1.bf16.msra.mxu0 0
    %1245 = vmatprep.subr.bf16.mxu0 0
    %1246 = vmatpush1.bf16.msra.mxu0 0
    %1247 = vmatprep.mubr.bf16.mxu0 0
    %1248 = vmatmul.mubr.bf16.gmra.mrb[0].mxu0 %v1213
    %v1249 = vpop.f32.mrb[0].mxu0
    %v1250 = vadd.f32 0.0, %v1249
    %v1251 = vpop.f32.mrb[0].mxu0
    %v1252 = vadd.f32 0.0, %v1251
    %v1253 = vpop.f32.mrb[0].mxu0
    %v1254 = vpop.f32.mrb[0].mxu0
    %1255 = vdwg.mxu0
    %1256 = vmatprep.subr.bf16.mxu0 %v335
    %1257 = vmatpush1.bf16.msra.mxu0 %v334
    %1258 = vmatprep.subr.bf16.mxu0 %v339
    %1259 = vmatpush1.bf16.msra.mxu0 %v338
    %1260 = vmatprep.subr.bf16.mxu0 %v343
    %1261 = vmatpush1.bf16.msra.mxu0 %v342
    %1262 = vmatprep.subr.bf16.mxu0 %v347
    %1263 = vmatpush1.bf16.msra.mxu0 %v346
    %1264 = vmatprep.subr.bf16.mxu0 %v351
    %1265 = vmatpush1.bf16.msra.mxu0 %v350
    %1266 = vmatprep.subr.bf16.mxu0 %v355
    %1267 = vmatpush1.bf16.msra.mxu0 %v354
    %1268 = vmatprep.subr.bf16.mxu0 %v359
    %1269 = vmatpush1.bf16.msra.mxu0 %v358
    %1270 = vmatprep.subr.bf16.mxu0 %v363
    %1271 = vmatpush1.bf16.msra.mxu0 %v362
    %1272 = vmatprep.subr.bf16.mxu0 0
    %1273 = vmatpush1.bf16.msra.mxu0 0
    %1274 = vmatprep.subr.bf16.mxu0 0
    %1275 = vmatpush1.bf16.msra.mxu0 0
    %1276 = vmatprep.subr.bf16.mxu0 0
    %1277 = vmatpush1.bf16.msra.mxu0 0
    %1278 = vmatprep.subr.bf16.mxu0 0
    %1279 = vmatpush1.bf16.msra.mxu0 0
    %1280 = vmatprep.subr.bf16.mxu0 0
    %1281 = vmatpush1.bf16.msra.mxu0 0
    %1282 = vmatprep.subr.bf16.mxu0 0
    %1283 = vmatpush1.bf16.msra.mxu0 0
    %1284 = vmatprep.subr.bf16.mxu0 0
    %1285 = vmatpush1.bf16.msra.mxu0 0
    %1286 = vmatprep.subr.bf16.mxu0 0
    %1287 = vmatpush1.bf16.msra.mxu0 0
    %1288 = vmatprep.mubr.bf16.mxu0 0
    %1289 = vmatmul.mubr.bf16.gmra.mrb[0].mxu0 %v1213
    %v1290 = vpop.f32.mrb[0].mxu0
    %v1291 = vadd.f32 0.0, %v1290
    %v1292 = vpop.f32.mrb[0].mxu0
    %v1293 = vadd.f32 0.0, %v1292
    %v1294 = vpop.f32.mrb[0].mxu0
    %v1295 = vpop.f32.mrb[0].mxu0
    %1296 = vdwg.mxu0
    %v1301 = vrot.slane %v1250, 4
    %v1302 = vrot.slane %v1252, 4
    %v1303 = vrot.slane %v1291, 4
    %v1304 = vrot.slane %v1293, 4
    %v1309 = vadd.f32 %v1207, %v1301
    %v1310 = vadd.f32 %v1208, %v1302
    %v1311 = vadd.f32 %v1209, %v1303
    %v1312 = vadd.f32 %v1210, %v1304
    %v1313 = vxor.u32 %v1309, 2147483648
    %v1314 = vmul.f32 %v1313, 1.442695
    %v1315 = vpow.pop %v1314
    %v1316 = vadd.f32 %v1315, 1.0
    %v1317 = vrcp.pop %v1316
    %v1318 = vmul.f32 1.0, %v1317
    %v1319 = vxor.u32 %v1310, 2147483648
    %v1320 = vmul.f32 %v1319, 1.442695
    %v1321 = vpow.pop %v1320
    %v1322 = vadd.f32 %v1321, 1.0
    %v1323 = vrcp.pop %v1322
    %v1324 = vmul.f32 1.0, %v1323
    %v1325 = vtanh.pop %v1311
    %v1326 = vxor.u32 %v1312, 2147483648
    %v1327 = vmul.f32 %v1326, 1.442695
    %v1328 = vpow.pop %v1327
    %v1329 = vadd.f32 %v1328, 1.0
    %v1330 = vrcp.pop %v1329
    %v1331 = vmul.f32 1.0, %v1330
    %v1333 = vrot.slane %v1194, 6
    %v1335 = vmul.f32 %v1324, %v1333
    %v1336 = vmul.f32 %v1318, %v1325
    %v1337 = vadd.f32 %v1335, %v1336
    %v1338 = vtanh.pop %v1337
    %v1339 = vmul.f32 %v1331, %v1338
    %vm1340 = vcmp.eq.s32.totalorder %v199, 6
    %v1341 = vsel %vm1340, 1, 0
    %1342 = vset.pattern.permute.xlu0 0
    %1343 = vperm.xlu0 %1342, %v1341
    %v1344 = vpop.permute.xlu0 %1343
    %vm1345 = vcmp.eq.s32.totalorder %v1344, 1
    %v1347 = vrot.slane %v1339, 4
    %v1349 = vsel %vm1345, %v1347, %v1206
    %v1350 = vld [vmem:[#allocation2 + $0x20] sm:$0xc0]
    %v1351 = vld [vmem:[#allocation2 + $0x28] sm:$0xc0]
    %v1352 = vld [vmem:[#allocation2 + $0x30] sm:$0xc0]
    %v1353 = vld [vmem:[#allocation2 + $0x38] sm:$0xc0]
    %v1354 = vpack.c.bf16 %v1339, %v1339
    %v1356 = vrot.slane %v1354, 2
    %1358 = vmatprep.subr.bf16.mxu0 %v333
    %1359 = vmatpush1.bf16.msra.mxu0 %v332
    %1360 = vmatprep.subr.bf16.mxu0 %v337
    %1361 = vmatpush1.bf16.msra.mxu0 %v336
    %1362 = vmatprep.subr.bf16.mxu0 %v341
    %1363 = vmatpush1.bf16.msra.mxu0 %v340
    %1364 = vmatprep.subr.bf16.mxu0 %v345
    %1365 = vmatpush1.bf16.msra.mxu0 %v344
    %1366 = vmatprep.subr.bf16.mxu0 %v349
    %1367 = vmatpush1.bf16.msra.mxu0 %v348
    %1368 = vmatprep.subr.bf16.mxu0 %v353
    %1369 = vmatpush1.bf16.msra.mxu0 %v352
    %1370 = vmatprep.subr.bf16.mxu0 %v357
    %1371 = vmatpush1.bf16.msra.mxu0 %v356
    %1372 = vmatprep.subr.bf16.mxu0 %v361
    %1373 = vmatpush1.bf16.msra.mxu0 %v360
    %1374 = vmatprep.subr.bf16.mxu0 0
    %1375 = vmatpush1.bf16.msra.mxu0 0
    %1376 = vmatprep.subr.bf16.mxu0 0
    %1377 = vmatpush1.bf16.msra.mxu0 0
    %1378 = vmatprep.subr.bf16.mxu0 0
    %1379 = vmatpush1.bf16.msra.mxu0 0
    %1380 = vmatprep.subr.bf16.mxu0 0
    %1381 = vmatpush1.bf16.msra.mxu0 0
    %1382 = vmatprep.subr.bf16.mxu0 0
    %1383 = vmatpush1.bf16.msra.mxu0 0
    %1384 = vmatprep.subr.bf16.mxu0 0
    %1385 = vmatpush1.bf16.msra.mxu0 0
    %1386 = vmatprep.subr.bf16.mxu0 0
    %1387 = vmatpush1.bf16.msra.mxu0 0
    %1388 = vmatprep.subr.bf16.mxu0 0
    %1389 = vmatpush1.bf16.msra.mxu0 0
    %1390 = vmatprep.mubr.bf16.mxu0 0
    %1391 = vmatmul.mubr.bf16.gmra.mrb[0].mxu0 %v1356
    %v1392 = vpop.f32.mrb[0].mxu0
    %v1393 = vadd.f32 0.0, %v1392
    %v1394 = vpop.f32.mrb[0].mxu0
    %v1395 = vadd.f32 0.0, %v1394
    %v1396 = vpop.f32.mrb[0].mxu0
    %v1397 = vpop.f32.mrb[0].mxu0
    %1398 = vdwg.mxu0
    %1399 = vmatprep.subr.bf16.mxu0 %v335
    %1400 = vmatpush1.bf16.msra.mxu0 %v334
    %1401 = vmatprep.subr.bf16.mxu0 %v339
    %1402 = vmatpush1.bf16.msra.mxu0 %v338
    %1403 = vmatprep.subr.bf16.mxu0 %v343
    %1404 = vmatpush1.bf16.msra.mxu0 %v342
    %1405 = vmatprep.subr.bf16.mxu0 %v347
    %1406 = vmatpush1.bf16.msra.mxu0 %v346
    %1407 = vmatprep.subr.bf16.mxu0 %v351
    %1408 = vmatpush1.bf16.msra.mxu0 %v350
    %1409 = vmatprep.subr.bf16.mxu0 %v355
    %1410 = vmatpush1.bf16.msra.mxu0 %v354
    %1411 = vmatprep.subr.bf16.mxu0 %v359
    %1412 = vmatpush1.bf16.msra.mxu0 %v358
    %1413 = vmatprep.subr.bf16.mxu0 %v363
    %1414 = vmatpush1.bf16.msra.mxu0 %v362
    %1415 = vmatprep.subr.bf16.mxu0 0
    %1416 = vmatpush1.bf16.msra.mxu0 0
    %1417 = vmatprep.subr.bf16.mxu0 0
    %1418 = vmatpush1.bf16.msra.mxu0 0
    %1419 = vmatprep.subr.bf16.mxu0 0
    %1420 = vmatpush1.bf16.msra.mxu0 0
    %1421 = vmatprep.subr.bf16.mxu0 0
    %1422 = vmatpush1.bf16.msra.mxu0 0
    %1423 = vmatprep.subr.bf16.mxu0 0
    %1424 = vmatpush1.bf16.msra.mxu0 0
    %1425 = vmatprep.subr.bf16.mxu0 0
    %1426 = vmatpush1.bf16.msra.mxu0 0
    %1427 = vmatprep.subr.bf16.mxu0 0
    %1428 = vmatpush1.bf16.msra.mxu0 0
    %1429 = vmatprep.subr.bf16.mxu0 0
    %1430 = vmatpush1.bf16.msra.mxu0 0
    %1431 = vmatprep.mubr.bf16.mxu0 0
    %1432 = vmatmul.mubr.bf16.gmra.mrb[0].mxu0 %v1356
    %v1433 = vpop.f32.mrb[0].mxu0
    %v1434 = vadd.f32 0.0, %v1433
    %v1435 = vpop.f32.mrb[0].mxu0
    %v1436 = vadd.f32 0.0, %v1435
    %v1437 = vpop.f32.mrb[0].mxu0
    %v1438 = vpop.f32.mrb[0].mxu0
    %1439 = vdwg.mxu0
    %v1444 = vrot.slane %v1393, 2
    %v1445 = vrot.slane %v1395, 2
    %v1446 = vrot.slane %v1434, 2
    %v1447 = vrot.slane %v1436, 2
    %v1452 = vadd.f32 %v1350, %v1444
    %v1453 = vadd.f32 %v1351, %v1445
    %v1454 = vadd.f32 %v1352, %v1446
    %v1455 = vadd.f32 %v1353, %v1447
    %v1456 = vxor.u32 %v1452, 2147483648
    %v1457 = vmul.f32 %v1456, 1.442695
    %v1458 = vpow.pop %v1457
    %v1459 = vadd.f32 %v1458, 1.0
    %v1460 = vrcp.pop %v1459
    %v1461 = vmul.f32 1.0, %v1460
    %v1462 = vxor.u32 %v1453, 2147483648
    %v1463 = vmul.f32 %v1462, 1.442695
    %v1464 = vpow.pop %v1463
    %v1465 = vadd.f32 %v1464, 1.0
    %v1466 = vrcp.pop %v1465
    %v1467 = vmul.f32 1.0, %v1466
    %v1468 = vtanh.pop %v1454
    %v1469 = vxor.u32 %v1455, 2147483648
    %v1470 = vmul.f32 %v1469, 1.442695
    %v1471 = vpow.pop %v1470
    %v1472 = vadd.f32 %v1471, 1.0
    %v1473 = vrcp.pop %v1472
    %v1474 = vmul.f32 1.0, %v1473
    %v1476 = vrot.slane %v1337, 6
    %v1478 = vmul.f32 %v1467, %v1476
    %v1479 = vmul.f32 %v1461, %v1468
    %v1480 = vadd.f32 %v1478, %v1479
    %v1481 = vtanh.pop %v1480
    %v1482 = vmul.f32 %v1474, %v1481
    %vm1483 = vcmp.eq.s32.totalorder %v199, 7
    %v1484 = vsel %vm1483, 1, 0
    %1485 = vset.pattern.permute.xlu0 0
    %1486 = vperm.xlu0 %1485, %v1484
    %v1487 = vpop.permute.xlu0 %1486
    %vm1488 = vcmp.eq.s32.totalorder %v1487, 1
    %v1490 = vrot.slane %v1482, 6
    %v1492 = vsel %vm1488, %v1490, %v1349
    %v1493 = vld [vmem:[%s5] sm:$0xff]
    %v1494 = vld [vmem:[%s5 + $0x8] sm:$0xff]
    %v1495 = vld [vmem:[%s5 + $0x10] sm:$0xff]
    %v1496 = vld [vmem:[%s5 + $0x18] sm:$0xff]
    %v1497 = vld [vmem:[%s5 + $0x20] sm:$0xff]
    %v1498 = vld [vmem:[%s5 + $0x28] sm:$0xff]
    %v1499 = vld [vmem:[%s5 + $0x30] sm:$0xff]
    %v1500 = vld [vmem:[%s5 + $0x38] sm:$0xff]
    %v1501 = vld [vmem:[%s5 + $0x40] sm:$0xff]
    %v1502 = vld [vmem:[%s5 + $0x48] sm:$0xff]
    %v1503 = vld [vmem:[%s5 + $0x50] sm:$0xff]
    %v1504 = vld [vmem:[%s5 + $0x58] sm:$0xff]
    %v1505 = vld [vmem:[%s5 + $0x60] sm:$0xff]
    %v1506 = vld [vmem:[%s5 + $0x68] sm:$0xff]
    %v1507 = vld [vmem:[%s5 + $0x70] sm:$0xff]
    %v1508 = vld [vmem:[%s5 + $0x78] sm:$0xff]
    %v1509 = vld [vmem:[%s6] sm:$0x1]
    %v1511 = vlaneseq
    %v1512 = vshrl.u32 %v1511, 7
    %v1513 = vsub.s32 0, %v1512
    %v1514 = vrot.slane %v1509, %v1513
    %1516 = vmatprep.subr.mxu0 0.0
    %1517 = vmatpush1.msra.mxu0 %v1493
    %1518 = vmatprep.subr.mxu0 0.0
    %1519 = vmatpush1.msra.mxu0 %v1494
    %1520 = vmatprep.subr.mxu0 0.0
    %1521 = vmatpush1.msra.mxu0 %v1495
    %1522 = vmatprep.subr.mxu0 0.0
    %1523 = vmatpush1.msra.mxu0 %v1496
    %1524 = vmatprep.subr.mxu0 0.0
    %1525 = vmatpush1.msra.mxu0 %v1497
    %1526 = vmatprep.subr.mxu0 0.0
    %1527 = vmatpush1.msra.mxu0 %v1498
    %1528 = vmatprep.subr.mxu0 0.0
    %1529 = vmatpush1.msra.mxu0 %v1499
    %1530 = vmatprep.subr.mxu0 0.0
    %1531 = vmatpush1.msra.mxu0 %v1500
    %1532 = vmatprep.subr.mxu0 0.0
    %1533 = vmatpush1.msra.mxu0 %v1501
    %1534 = vmatprep.subr.mxu0 0.0
    %1535 = vmatpush1.msra.mxu0 %v1502
    %1536 = vmatprep.subr.mxu0 0.0
    %1537 = vmatpush1.msra.mxu0 %v1503
    %1538 = vmatprep.subr.mxu0 0.0
    %1539 = vmatpush1.msra.mxu0 %v1504
    %1540 = vmatprep.subr.mxu0 0.0
    %1541 = vmatpush1.msra.mxu0 %v1505
    %1542 = vmatprep.subr.mxu0 0.0
    %1543 = vmatpush1.msra.mxu0 %v1506
    %1544 = vmatprep.subr.mxu0 0.0
    %1545 = vmatpush1.msra.mxu0 %v1507
    %1546 = vmatprep.subr.mxu0 0.0
    %1547 = vmatpush1.msra.mxu0 %v1508
    %1548 = vmatprep.subr.mxu0 0.0
    %1549 = vmatpush1.msra.mxu0 0.0
    %1550 = vmatprep.subr.mxu0 0.0
    %1551 = vmatpush1.msra.mxu0 0.0
    %1552 = vmatprep.subr.mxu0 0.0
    %1553 = vmatpush1.msra.mxu0 0.0
    %1554 = vmatprep.subr.mxu0 0.0
    %1555 = vmatpush1.msra.mxu0 0.0
    %1556 = vmatprep.subr.mxu0 0.0
    %1557 = vmatpush1.msra.mxu0 0.0
    %1558 = vmatprep.subr.mxu0 0.0
    %1559 = vmatpush1.msra.mxu0 0.0
    %1560 = vmatprep.subr.mxu0 0.0
    %1561 = vmatpush1.msra.mxu0 0.0
    %1562 = vmatprep.subr.mxu0 0.0
    %1563 = vmatpush1.msra.mxu0 0.0
    %1564 = vmatprep.subr.mxu0 0.0
    %1565 = vmatpush1.msra.mxu0 0.0
    %1566 = vmatprep.subr.mxu0 0.0
    %1567 = vmatpush1.msra.mxu0 0.0
    %1568 = vmatprep.subr.mxu0 0.0
    %1569 = vmatpush1.msra.mxu0 0.0
    %1570 = vmatprep.subr.mxu0 0.0
    %1571 = vmatpush1.msra.mxu0 0.0
    %1572 = vmatprep.subr.mxu0 0.0
    %1573 = vmatpush1.msra.mxu0 0.0
    %1574 = vmatprep.subr.mxu0 0.0
    %1575 = vmatpush1.msra.mxu0 0.0
    %1576 = vmatprep.subr.mxu0 0.0
    %1577 = vmatpush1.msra.mxu0 0.0
    %1578 = vmatprep.subr.mxu0 0.0
    %1579 = vmatpush1.msra.mxu0 0.0
    %1580 = vmatprep.mubr.f32.mxu0 0.0
    %1581 = vmatmul.mubr.f32.gmra.mrb[0].mxu0 %v1492
    %v1582 = vpop.f32.mrb[0].mxu0
    %v1583 = vadd.f32 %v1514, %v1582
    %v1584 = vpop.f32.mrb[0].mxu0
    %1585 = vdwg.mxu0
    %vm1586 = vcmask 9216
    %1587 = vst.msk [vmem:[#allocation3] sm:$0x3] %vm1586, %v1583
    // Predicated region
    $region30: #{forward.1} parent=1 // pred_check
      _
    $region31: #{forward.1} parent=1 // pred_check_branch
      %1589 = sbr.rel (0) target = $region33
    $region32: #{forward.1} parent=1 // pred_region
      %s1591 = ssub.s32 32, 32
      %1592 = vsyncadd [#allocation4], %s1591
      %s1594 = sshll.u32 [#allocation3], 4
      %s1595 = int_to_ptr.vmem [resolvable:$true] %s1594
      %1597 = dma.vmem_to_hbm [thread:$0]  %s1595, 32, %s7, [#allocation4]
    $region33: #{forward.1} parent=1 // pred_fallthru
      _
    // Predicated region
    $region34: #{forward.1} parent=1 // pred_check
      _
    $region35: #{forward.1} parent=1 // pred_check_branch
      %1599 = sbr.rel (0) target = $region37
    $region36: #{forward.1} parent=1 // pred_region
      %1600 = dma.done [#allocation4], 32
    $region37: #{forward.1} parent=1 // pred_fallthru
      _
    %1601 = vsyncpa [#allocation4], 1

</llo_original>
